<compile_context>
chip_gen: v5e
topology: v5e:2x2
jax: 0.10.0
libtpu: 0.0.40
codegen_flags: <defaults>
</compile_context>

<pallas_src>
import functools

import jax
import jax.numpy as jnp
from jax.experimental import pallas as pl
from jax.experimental.pallas import tpu as pltpu

BN_EPS = 1e-5


# ----------------------------- Pallas kernels ------------------------------ #

def conv_pool_stats_kernel(xp_ref, w_ref, b_ref, s1_ref, s2_ref, *, H, W, C):
    """3x3 conv (pad already applied) + bias for ONE image, reduced on the fly
    to per-channel sum and sum-of-squares.  The conv activation never leaves
    VMEM.

      xp_ref : (H+2, W+2, C)   padded NHWC image tile
      w_ref  : (3, 3, C, C)    weights laid out as [kh, kw, cin, cout]
      b_ref  : (1, C)          bias
      s1_ref : (1, C)          sum_{h,w} y[h, w, c]
      s2_ref : (1, C)          sum_{h,w} y[h, w, c]^2
    """
    acc = jnp.zeros((H * W, C), jnp.float32)
    for kh in range(3):
        for kw in range(3):
            win = xp_ref[kh:kh + H, kw:kw + W, :]           # (H, W, C)
            win = win.reshape(H * W, C)                     # collapse to 2-D for MXU
            acc = acc + jnp.dot(win, w_ref[kh, kw],
                                preferred_element_type=jnp.float32)
    y = acc + b_ref[...]                                    # (H*W, C)
    s1_ref[...] = jnp.sum(y, axis=0, keepdims=True)
    s2_ref[...] = jnp.sum(y * y, axis=0, keepdims=True)


def attention_kernel(s1_ref, s2_ref, gamma_ref, beta_ref, w1_ref, a_ref, w2_ref,
                     att_ref, *, n_pix, n_total):
    """Fused: batch-stat BN (applied to the pooled conv output via the affine
    identity), squeeze 1x1 conv, PReLU, excite 1x1 conv, sigmoid.

      s1/s2  : (B, C) per-image sums from kernel 1
      gamma/beta : (1, C) BN affine
      w1     : (C, number)   a_ref : (1, 1) PReLU slope   w2 : (number, C)
      att    : (B, C) channel attention weights
    """
    s1 = s1_ref[...]
    s2 = s2_ref[...]
    p1 = s1 * (1.0 / n_pix)                                  # per-image pooled conv mean
    mu = jnp.sum(s1, axis=0, keepdims=True) * (1.0 / n_total)
    ex2 = jnp.sum(s2, axis=0, keepdims=True) * (1.0 / n_total)
    var = ex2 - mu * mu                                      # biased variance (PyTorch BN train)
    inv = jax.lax.rsqrt(var + BN_EPS)
    pooled = (p1 - mu) * inv * gamma_ref[...] + beta_ref[...]  # == avg_pool(BN(conv(x)))

    h = jnp.dot(pooled, w1_ref[...], preferred_element_type=jnp.float32)  # (B, number)
    h = jnp.where(h > 0.0, h, h * a_ref[...])                              # PReLU
    logits = jnp.dot(h, w2_ref[...], preferred_element_type=jnp.float32)   # (B, C)
    att_ref[...] = 1.0 / (1.0 + jnp.exp(-logits))                          # sigmoid


def scale_kernel(x_ref, att_ref, o_ref):
    """out = x * attention (broadcast per channel) for ONE image."""
    att = att_ref[...]                                       # (1, C)
    o_ref[...] = x_ref[...] * att.reshape(1, 1, att.shape[-1])


# --------------------------- pallas_call wrappers --------------------------- #

def pallas_conv_pool_stats(xp, wmat, bias_2d, H, W):
    B, Hp, Wp, C = xp.shape
    kernel = functools.partial(conv_pool_stats_kernel, H=H, W=W, C=C)
    cost = pl.CostEstimate(
        flops=2 * 9 * B * H * W * C * C,
        transcendentals=0,
        bytes_accessed=4 * (xp.size + wmat.size + bias_2d.size + 2 * B * C))
    s1, s2 = pl.pallas_call(
        kernel,
        out_shape=(jax.ShapeDtypeStruct((B, 1, C), jnp.float32),
                   jax.ShapeDtypeStruct((B, 1, C), jnp.float32)),
        grid=(B,),
        in_specs=[
            pl.BlockSpec((None, Hp, Wp, C), lambda b: (b, 0, 0, 0)),  # one padded image
            pl.BlockSpec((3, 3, C, C), lambda b: (0, 0, 0, 0)),       # weights (constant)
            pl.BlockSpec((1, C), lambda b: (0, 0)),                   # bias
        ],
        out_specs=(pl.BlockSpec((None, 1, C), lambda b: (b, 0, 0)),
                   pl.BlockSpec((None, 1, C), lambda b: (b, 0, 0))),
        compiler_params=pltpu.CompilerParams(
            dimension_semantics=("parallel",),          # independent per image -> megacore
            vmem_limit_bytes=32 * 1024 * 1024),
        cost_estimate=cost,
    )(xp, wmat, bias_2d)
    return s1.reshape(B, C), s2.reshape(B, C)


def pallas_attention(s1, s2, gamma, beta, w1_mat, prelu_a, w2_mat, n_pix, n_total):
    B, C = s1.shape
    kernel = functools.partial(attention_kernel,
                               n_pix=float(n_pix), n_total=float(n_total))
    # Everything here is KB-scale ((B,C), (C,number), (number,C)): a single
    # whole-array invocation is the right granularity.
    return pl.pallas_call(
        kernel,
        out_shape=jax.ShapeDtypeStruct((B, C), jnp.float32),
    )(s1, s2, gamma.reshape(1, C), beta.reshape(1, C),
      w1_mat, prelu_a.reshape(1, 1), w2_mat)


def pallas_scale(x_nhwc, att_b1c):
    B, H, W, C = x_nhwc.shape
    return pl.pallas_call(
        scale_kernel,
        out_shape=jax.ShapeDtypeStruct((B, H, W, C), jnp.float32),
        grid=(B,),
        in_specs=[
            pl.BlockSpec((None, H, W, C), lambda b: (b, 0, 0, 0)),
            pl.BlockSpec((None, 1, C), lambda b: (b, 0, 0)),
        ],
        out_specs=pl.BlockSpec((None, H, W, C), lambda b: (b, 0, 0, 0)),
        compiler_params=pltpu.CompilerParams(
            dimension_semantics=("parallel",),
            vmem_limit_bytes=32 * 1024 * 1024),
    )(x_nhwc, att_b1c)


# ------------------------------- CALayer ------------------------------------ #

def init_params(key, nc=64, number=16):
    k = jax.random.split(key, 6)
    return dict(
        w_conv=jax.random.normal(k[0], (nc, nc, 3, 3), jnp.float32) * 0.05,
        b_conv=jax.random.normal(k[1], (nc,), jnp.float32) * 0.05,
        gamma=1.0 + 0.1 * jax.random.normal(k[2], (nc,), jnp.float32),
        beta=0.1 * jax.random.normal(k[3], (nc,), jnp.float32),
        w1=jax.random.normal(k[4], (number, nc, 1, 1), jnp.float32) * 0.1,
        prelu_a=jnp.array(0.25, jnp.float32),               # nn.PReLU() default init
        w2=jax.random.normal(k[5], (nc, number, 1, 1), jnp.float32) * 0.1,
    )


def ca_layer_forward(params, x_nchw):
    B, C, H, W = x_nchw.shape
    assert W % 8 == 0, "W must be a multiple of 8 for the in-kernel window reshape"

    x = jnp.transpose(x_nchw, (0, 2, 3, 1))                  # NCHW -> NHWC
    xp = jnp.pad(x, ((0, 0), (1, 1), (1, 1), (0, 0)))        # conv padding=1

    # conv weights as [kh, kw, cin, cout]; 1x1 conv weights as plain matrices.
    wmat = jnp.transpose(params["w_conv"], (2, 3, 1, 0))     # (3, 3, C, C)
    bias_2d = params["b_conv"].reshape(1, C)
    number = params["w1"].shape[0]
    w1_mat = params["w1"].reshape(number, C).T               # (C, number)
    w2_mat = params["w2"].reshape(C, number).T               # (number, C)

    # Kernel 1: conv3x3 + bias, reduced in-VMEM to per-image channel sums.
    s1, s2 = pallas_conv_pool_stats(xp, wmat, bias_2d, H, W)

    # Kernel 2: BN(batch stats) on the pooled values + squeeze/excite MLP.
    att = pallas_attention(s1, s2, params["gamma"], params["beta"],
                           w1_mat, params["prelu_a"], w2_mat,
                           n_pix=H * W, n_total=B * H * W)   # (B, C)

    # Kernel 3: out = x * attention.
    out = pallas_scale(x, att.reshape(B, 1, C))              # NHWC
    return jnp.transpose(out, (0, 3, 1, 2))                  # back to NCHW


# ------------------------------ pure-JAX ref -------------------------------- #

def reference_forward(params, x_nchw):
    y = jax.lax.conv_general_dilated(
        x_nchw, params["w_conv"], (1, 1), [(1, 1), (1, 1)],
        dimension_numbers=("NCHW", "OIHW", "NCHW"),
        precision=jax.lax.Precision.HIGHEST)
    y = y + params["b_conv"].reshape(1, -1, 1, 1)
    mean = jnp.mean(y, axis=(0, 2, 3), keepdims=True)
    var = jnp.mean((y - mean) ** 2, axis=(0, 2, 3), keepdims=True)
    y = (y - mean) * jax.lax.rsqrt(var + BN_EPS)
    y = y * params["gamma"].reshape(1, -1, 1, 1) + params["beta"].reshape(1, -1, 1, 1)
    pooled = jnp.mean(y, axis=(2, 3))                        # (B, C)
    number, C = params["w1"].shape[0], params["w1"].shape[1]
    h = pooled @ params["w1"].reshape(number, C).T           # (B, number)
    h = jnp.where(h > 0, h, params["prelu_a"] * h)           # PReLU
    att = jax.nn.sigmoid(h @ params["w2"].reshape(C, number).T)  # (B, C)
    return x_nchw * att[:, :, None, None]


if __name__ == "__main__":
    key = jax.random.PRNGKey(0)
    pkey, xkey = jax.random.split(key)
    nc, number = 64, 16
    params = init_params(pkey, nc=nc, number=number)
    x = jax.random.normal(xkey, (2, nc, 16, 16), jnp.float32)

    out = ca_layer_forward(params, x)
    out = jax.block_until_ready(out)
    assert out.shape == x.shape, out.shape

    ref = reference_forward(params, x)
    if not bool(jnp.allclose(out, ref, atol=1e-3, rtol=1e-3)):
        err = float(jnp.max(jnp.abs(out - ref)))
        raise AssertionError(f"mismatch vs reference: max abs err = {err}")

    print("KERNEL_OK")
</pallas_src>

<mosaic_0001>
module attributes {stable_mosaic.version = 11 : i64} {
  func.func @conv_pool_stats_kernel(%arg0: i32, %arg1: memref<1x18x18x64xf32, #tpu.memory_space<vmem>>, %arg2: memref<3x3x64x64xf32, #tpu.memory_space<vmem>>, %arg3: memref<1x64xf32, #tpu.memory_space<vmem>>, %arg4: memref<1x1x64xf32, #tpu.memory_space<vmem>>, %arg5: memref<1x1x64xf32, #tpu.memory_space<vmem>>) attributes {dimension_semantics = [#tpu.dimension_semantics<parallel>], iteration_bounds = array<i64: 2>, scalar_prefetch = 0 : i64, scratch_operands = 0 : i64, tpu.core_type = #tpu.core_type<tc>, window_params = [{transform_indices = @transform_0, window_bounds = array<i64: 1, 18, 18, 64>}, {pipeline_mode = #tpu.pipeline_mode<synchronous>, transform_indices = @transform_1, window_bounds = array<i64: 3, 3, 64, 64>}, {pipeline_mode = #tpu.pipeline_mode<synchronous>, transform_indices = @transform_2, window_bounds = array<i64: 1, 64>}, {transform_indices = @transform_3, window_bounds = array<i64: 1, 1, 64>}, {transform_indices = @transform_4, window_bounds = array<i64: 1, 1, 64>}]} {
    %cst = arith.constant 0.000000e+00 : f32
    %0 = vector.broadcast %cst : f32 to vector<256x64xf32>
    %c0 = arith.constant 0 : index
    %c0_0 = arith.constant 0 : index
    %c0_1 = arith.constant 0 : index
    %c0_2 = arith.constant 0 : index
    %1 = vector.load %arg1[%c0, %c0_0, %c0_1, %c0_2] : memref<1x18x18x64xf32, #tpu.memory_space<vmem>>, vector<1x16x16x64xf32>
    %2 = vector.shape_cast %1 : vector<1x16x16x64xf32> to vector<16x16x64xf32>
    %3 = vector.shape_cast %2 : vector<16x16x64xf32> to vector<256x64xf32>
    %c0_3 = arith.constant 0 : index
    %c0_4 = arith.constant 0 : index
    %c0_5 = arith.constant 0 : index
    %c0_6 = arith.constant 0 : index
    %4 = vector.load %arg2[%c0_3, %c0_4, %c0_5, %c0_6] : memref<3x3x64x64xf32, #tpu.memory_space<vmem>>, vector<1x1x64x64xf32>
    %5 = vector.shape_cast %4 : vector<1x1x64x64xf32> to vector<64x64xf32>
    %cst_7 = arith.constant dense<0.000000e+00> : vector<256x64xf32>
    %6 = tpu.matmul %3, %5, %cst_7 {dimension_numbers = #tpu.dot_dimension_numbers<[1], [0], [0], [1], [0, 0, 1, 1], [], []>} : vector<256x64xf32>, vector<64x64xf32>, vector<256x64xf32> -> vector<256x64xf32>
    %7 = arith.addf %0, %6 : vector<256x64xf32>
    %c0_8 = arith.constant 0 : index
    %c0_9 = arith.constant 0 : index
    %c1 = arith.constant 1 : index
    %c0_10 = arith.constant 0 : index
    %8 = vector.load %arg1[%c0_8, %c0_9, %c1, %c0_10] : memref<1x18x18x64xf32, #tpu.memory_space<vmem>>, vector<1x16x16x64xf32>
    %9 = vector.shape_cast %8 : vector<1x16x16x64xf32> to vector<16x16x64xf32>
    %10 = vector.shape_cast %9 : vector<16x16x64xf32> to vector<256x64xf32>
    %c0_11 = arith.constant 0 : index
    %c1_12 = arith.constant 1 : index
    %c0_13 = arith.constant 0 : index
    %c0_14 = arith.constant 0 : index
    %11 = vector.load %arg2[%c0_11, %c1_12, %c0_13, %c0_14] : memref<3x3x64x64xf32, #tpu.memory_space<vmem>>, vector<1x1x64x64xf32>
    %12 = vector.shape_cast %11 : vector<1x1x64x64xf32> to vector<64x64xf32>
    %cst_15 = arith.constant dense<0.000000e+00> : vector<256x64xf32>
    %13 = tpu.matmul %10, %12, %cst_15 {dimension_numbers = #tpu.dot_dimension_numbers<[1], [0], [0], [1], [0, 0, 1, 1], [], []>} : vector<256x64xf32>, vector<64x64xf32>, vector<256x64xf32> -> vector<256x64xf32>
    %14 = arith.addf %7, %13 : vector<256x64xf32>
    %c0_16 = arith.constant 0 : index
    %c0_17 = arith.constant 0 : index
    %c2 = arith.constant 2 : index
    %c0_18 = arith.constant 0 : index
    %15 = vector.load %arg1[%c0_16, %c0_17, %c2, %c0_18] : memref<1x18x18x64xf32, #tpu.memory_space<vmem>>, vector<1x16x16x64xf32>
    %16 = vector.shape_cast %15 : vector<1x16x16x64xf32> to vector<16x16x64xf32>
    %17 = vector.shape_cast %16 : vector<16x16x64xf32> to vector<256x64xf32>
    %c0_19 = arith.constant 0 : index
    %c2_20 = arith.constant 2 : index
    %c0_21 = arith.constant 0 : index
    %c0_22 = arith.constant 0 : index
    %18 = vector.load %arg2[%c0_19, %c2_20, %c0_21, %c0_22] : memref<3x3x64x64xf32, #tpu.memory_space<vmem>>, vector<1x1x64x64xf32>
    %19 = vector.shape_cast %18 : vector<1x1x64x64xf32> to vector<64x64xf32>
    %cst_23 = arith.constant dense<0.000000e+00> : vector<256x64xf32>
    %20 = tpu.matmul %17, %19, %cst_23 {dimension_numbers = #tpu.dot_dimension_numbers<[1], [0], [0], [1], [0, 0, 1, 1], [], []>} : vector<256x64xf32>, vector<64x64xf32>, vector<256x64xf32> -> vector<256x64xf32>
    %21 = arith.addf %14, %20 : vector<256x64xf32>
    %c0_24 = arith.constant 0 : index
    %c1_25 = arith.constant 1 : index
    %c0_26 = arith.constant 0 : index
    %c0_27 = arith.constant 0 : index
    %22 = vector.load %arg1[%c0_24, %c1_25, %c0_26, %c0_27] : memref<1x18x18x64xf32, #tpu.memory_space<vmem>>, vector<1x16x16x64xf32>
    %23 = vector.shape_cast %22 : vector<1x16x16x64xf32> to vector<16x16x64xf32>
    %24 = vector.shape_cast %23 : vector<16x16x64xf32> to vector<256x64xf32>
    %c1_28 = arith.constant 1 : index
    %c0_29 = arith.constant 0 : index
    %c0_30 = arith.constant 0 : index
    %c0_31 = arith.constant 0 : index
    %25 = vector.load %arg2[%c1_28, %c0_29, %c0_30, %c0_31] : memref<3x3x64x64xf32, #tpu.memory_space<vmem>>, vector<1x1x64x64xf32>
    %26 = vector.shape_cast %25 : vector<1x1x64x64xf32> to vector<64x64xf32>
    %cst_32 = arith.constant dense<0.000000e+00> : vector<256x64xf32>
    %27 = tpu.matmul %24, %26, %cst_32 {dimension_numbers = #tpu.dot_dimension_numbers<[1], [0], [0], [1], [0, 0, 1, 1], [], []>} : vector<256x64xf32>, vector<64x64xf32>, vector<256x64xf32> -> vector<256x64xf32>
    %28 = arith.addf %21, %27 : vector<256x64xf32>
    %c0_33 = arith.constant 0 : index
    %c1_34 = arith.constant 1 : index
    %c1_35 = arith.constant 1 : index
    %c0_36 = arith.constant 0 : index
    %29 = vector.load %arg1[%c0_33, %c1_34, %c1_35, %c0_36] : memref<1x18x18x64xf32, #tpu.memory_space<vmem>>, vector<1x16x16x64xf32>
    %30 = vector.shape_cast %29 : vector<1x16x16x64xf32> to vector<16x16x64xf32>
    %31 = vector.shape_cast %30 : vector<16x16x64xf32> to vector<256x64xf32>
    %c1_37 = arith.constant 1 : index
    %c1_38 = arith.constant 1 : index
    %c0_39 = arith.constant 0 : index
    %c0_40 = arith.constant 0 : index
    %32 = vector.load %arg2[%c1_37, %c1_38, %c0_39, %c0_40] : memref<3x3x64x64xf32, #tpu.memory_space<vmem>>, vector<1x1x64x64xf32>
    %33 = vector.shape_cast %32 : vector<1x1x64x64xf32> to vector<64x64xf32>
    %cst_41 = arith.constant dense<0.000000e+00> : vector<256x64xf32>
    %34 = tpu.matmul %31, %33, %cst_41 {dimension_numbers = #tpu.dot_dimension_numbers<[1], [0], [0], [1], [0, 0, 1, 1], [], []>} : vector<256x64xf32>, vector<64x64xf32>, vector<256x64xf32> -> vector<256x64xf32>
    %35 = arith.addf %28, %34 : vector<256x64xf32>
    %c0_42 = arith.constant 0 : index
    %c1_43 = arith.constant 1 : index
    %c2_44 = arith.constant 2 : index
    %c0_45 = arith.constant 0 : index
    %36 = vector.load %arg1[%c0_42, %c1_43, %c2_44, %c0_45] : memref<1x18x18x64xf32, #tpu.memory_space<vmem>>, vector<1x16x16x64xf32>
    %37 = vector.shape_cast %36 : vector<1x16x16x64xf32> to vector<16x16x64xf32>
    %38 = vector.shape_cast %37 : vector<16x16x64xf32> to vector<256x64xf32>
    %c1_46 = arith.constant 1 : index
    %c2_47 = arith.constant 2 : index
    %c0_48 = arith.constant 0 : index
    %c0_49 = arith.constant 0 : index
    %39 = vector.load %arg2[%c1_46, %c2_47, %c0_48, %c0_49] : memref<3x3x64x64xf32, #tpu.memory_space<vmem>>, vector<1x1x64x64xf32>
    %40 = vector.shape_cast %39 : vector<1x1x64x64xf32> to vector<64x64xf32>
    %cst_50 = arith.constant dense<0.000000e+00> : vector<256x64xf32>
    %41 = tpu.matmul %38, %40, %cst_50 {dimension_numbers = #tpu.dot_dimension_numbers<[1], [0], [0], [1], [0, 0, 1, 1], [], []>} : vector<256x64xf32>, vector<64x64xf32>, vector<256x64xf32> -> vector<256x64xf32>
    %42 = arith.addf %35, %41 : vector<256x64xf32>
    %c0_51 = arith.constant 0 : index
    %c2_52 = arith.constant 2 : index
    %c0_53 = arith.constant 0 : index
    %c0_54 = arith.constant 0 : index
    %43 = vector.load %arg1[%c0_51, %c2_52, %c0_53, %c0_54] : memref<1x18x18x64xf32, #tpu.memory_space<vmem>>, vector<1x16x16x64xf32>
    %44 = vector.shape_cast %43 : vector<1x16x16x64xf32> to vector<16x16x64xf32>
    %45 = vector.shape_cast %44 : vector<16x16x64xf32> to vector<256x64xf32>
    %c2_55 = arith.constant 2 : index
    %c0_56 = arith.constant 0 : index
    %c0_57 = arith.constant 0 : index
    %c0_58 = arith.constant 0 : index
    %46 = vector.load %arg2[%c2_55, %c0_56, %c0_57, %c0_58] : memref<3x3x64x64xf32, #tpu.memory_space<vmem>>, vector<1x1x64x64xf32>
    %47 = vector.shape_cast %46 : vector<1x1x64x64xf32> to vector<64x64xf32>
    %cst_59 = arith.constant dense<0.000000e+00> : vector<256x64xf32>
    %48 = tpu.matmul %45, %47, %cst_59 {dimension_numbers = #tpu.dot_dimension_numbers<[1], [0], [0], [1], [0, 0, 1, 1], [], []>} : vector<256x64xf32>, vector<64x64xf32>, vector<256x64xf32> -> vector<256x64xf32>
    %49 = arith.addf %42, %48 : vector<256x64xf32>
    %c0_60 = arith.constant 0 : index
    %c2_61 = arith.constant 2 : index
    %c1_62 = arith.constant 1 : index
    %c0_63 = arith.constant 0 : index
    %50 = vector.load %arg1[%c0_60, %c2_61, %c1_62, %c0_63] : memref<1x18x18x64xf32, #tpu.memory_space<vmem>>, vector<1x16x16x64xf32>
    %51 = vector.shape_cast %50 : vector<1x16x16x64xf32> to vector<16x16x64xf32>
    %52 = vector.shape_cast %51 : vector<16x16x64xf32> to vector<256x64xf32>
    %c2_64 = arith.constant 2 : index
    %c1_65 = arith.constant 1 : index
    %c0_66 = arith.constant 0 : index
    %c0_67 = arith.constant 0 : index
    %53 = vector.load %arg2[%c2_64, %c1_65, %c0_66, %c0_67] : memref<3x3x64x64xf32, #tpu.memory_space<vmem>>, vector<1x1x64x64xf32>
    %54 = vector.shape_cast %53 : vector<1x1x64x64xf32> to vector<64x64xf32>
    %cst_68 = arith.constant dense<0.000000e+00> : vector<256x64xf32>
    %55 = tpu.matmul %52, %54, %cst_68 {dimension_numbers = #tpu.dot_dimension_numbers<[1], [0], [0], [1], [0, 0, 1, 1], [], []>} : vector<256x64xf32>, vector<64x64xf32>, vector<256x64xf32> -> vector<256x64xf32>
    %56 = arith.addf %49, %55 : vector<256x64xf32>
    %c0_69 = arith.constant 0 : index
    %c2_70 = arith.constant 2 : index
    %c2_71 = arith.constant 2 : index
    %c0_72 = arith.constant 0 : index
    %57 = vector.load %arg1[%c0_69, %c2_70, %c2_71, %c0_72] : memref<1x18x18x64xf32, #tpu.memory_space<vmem>>, vector<1x16x16x64xf32>
    %58 = vector.shape_cast %57 : vector<1x16x16x64xf32> to vector<16x16x64xf32>
    %59 = vector.shape_cast %58 : vector<16x16x64xf32> to vector<256x64xf32>
    %c2_73 = arith.constant 2 : index
    %c2_74 = arith.constant 2 : index
    %c0_75 = arith.constant 0 : index
    %c0_76 = arith.constant 0 : index
    %60 = vector.load %arg2[%c2_73, %c2_74, %c0_75, %c0_76] : memref<3x3x64x64xf32, #tpu.memory_space<vmem>>, vector<1x1x64x64xf32>
    %61 = vector.shape_cast %60 : vector<1x1x64x64xf32> to vector<64x64xf32>
    %cst_77 = arith.constant dense<0.000000e+00> : vector<256x64xf32>
    %62 = tpu.matmul %59, %61, %cst_77 {dimension_numbers = #tpu.dot_dimension_numbers<[1], [0], [0], [1], [0, 0, 1, 1], [], []>} : vector<256x64xf32>, vector<64x64xf32>, vector<256x64xf32> -> vector<256x64xf32>
    %63 = arith.addf %56, %62 : vector<256x64xf32>
    %c0_78 = arith.constant 0 : index
    %c0_79 = arith.constant 0 : index
    %64 = vector.load %arg3[%c0_78, %c0_79] : memref<1x64xf32, #tpu.memory_space<vmem>>, vector<1x64xf32>
    %65 = vector.broadcast %64 : vector<1x64xf32> to vector<256x64xf32>
    %66 = arith.addf %63, %65 : vector<256x64xf32>
    %cst_80 = arith.constant dense<0.000000e+00> : vector<64xf32>
    %67 = vector.multi_reduction <add>, %66, %cst_80 [0] : vector<256x64xf32> to vector<64xf32>
    %68 = vector.shape_cast %67 : vector<64xf32> to vector<1x64xf32>
    %c0_81 = arith.constant 0 : index
    %c0_82 = arith.constant 0 : index
    %c0_83 = arith.constant 0 : index
    %69 = vector.load %arg4[%c0_81, %c0_82, %c0_83] : memref<1x1x64xf32, #tpu.memory_space<vmem>>, vector<1x1x64xf32>
    %70 = vector.shape_cast %69 : vector<1x1x64xf32> to vector<1x64xf32>
    %71 = vector.shape_cast %68 : vector<1x64xf32> to vector<1x1x64xf32>
    tpu.vector_store %arg4[%c0_81, %c0_82, %c0_83], %71 {strides = array<i32>} : memref<1x1x64xf32, #tpu.memory_space<vmem>>, vector<1x1x64xf32>,
    %72 = arith.mulf %66, %66 : vector<256x64xf32>
    %cst_84 = arith.constant dense<0.000000e+00> : vector<64xf32>
    %73 = vector.multi_reduction <add>, %72, %cst_84 [0] : vector<256x64xf32> to vector<64xf32>
    %74 = vector.shape_cast %73 : vector<64xf32> to vector<1x64xf32>
    %c0_85 = arith.constant 0 : index
    %c0_86 = arith.constant 0 : index
    %c0_87 = arith.constant 0 : index
    %75 = vector.load %arg5[%c0_85, %c0_86, %c0_87] : memref<1x1x64xf32, #tpu.memory_space<vmem>>, vector<1x1x64xf32>
    %76 = vector.shape_cast %75 : vector<1x1x64xf32> to vector<1x64xf32>
    %77 = vector.shape_cast %74 : vector<1x64xf32> to vector<1x1x64xf32>
    tpu.vector_store %arg5[%c0_85, %c0_86, %c0_87], %77 {strides = array<i32>} : memref<1x1x64xf32, #tpu.memory_space<vmem>>, vector<1x1x64xf32>,
    return
  }
  func.func @transform_0(%arg0: i32) -> (i32, i32, i32, i32) {
    %c0_i32 = arith.constant 0 : i32
    %c0_i32_0 = arith.constant 0 : i32
    %c0_i32_1 = arith.constant 0 : i32
    %c0_i32_2 = arith.constant 0 : i32
    return %arg0, %c0_i32, %c0_i32_0, %c0_i32_1 : i32, i32, i32, i32
  }
  func.func @transform_1(%arg0: i32) -> (i32, i32, i32, i32) {
    %c0_i32 = arith.constant 0 : i32
    %c0_i32_0 = arith.constant 0 : i32
    %c0_i32_1 = arith.constant 0 : i32
    %c0_i32_2 = arith.constant 0 : i32
    %c0_i32_3 = arith.constant 0 : i32
    return %c0_i32, %c0_i32_0, %c0_i32_1, %c0_i32_2 : i32, i32, i32, i32
  }
  func.func @transform_2(%arg0: i32) -> (i32, i32) {
    %c0_i32 = arith.constant 0 : i32
    %c0_i32_0 = arith.constant 0 : i32
    %c0_i32_1 = arith.constant 0 : i32
    return %c0_i32, %c0_i32_0 : i32, i32
  }
  func.func @transform_3(%arg0: i32) -> (i32, i32, i32) {
    %c0_i32 = arith.constant 0 : i32
    %c0_i32_0 = arith.constant 0 : i32
    %c0_i32_1 = arith.constant 0 : i32
    return %arg0, %c0_i32, %c0_i32_0 : i32, i32, i32
  }
  func.func @transform_4(%arg0: i32) -> (i32, i32, i32) {
    %c0_i32 = arith.constant 0 : i32
    %c0_i32_0 = arith.constant 0 : i32
    %c0_i32_1 = arith.constant 0 : i32
    return %arg0, %c0_i32, %c0_i32_0 : i32, i32, i32
  }
}

</mosaic_0001>

<llo_original>
// kernel: tpu_custom_call.1
$region0: #{tpu_custom_call.1}
  #allocation0 [shape = 'u32[]', space=smem, size = 0x4, offset = 0x4, fixed_abs, tag = 'smem constant byte address 0x4 - core index']
  #allocation1 [shape = 'u32[72,128]{1,0:T(1,128)}', space=vmem, size = 0x9000, scoped, tag = 'internal scratch']
  %s0 = inlined_call_operand.vmem [shape: f32[2,18,18,64], index: 0, kind: input, shape index: {}]
  %s1 = inlined_call_operand.vmem [shape: f32[3,3,64,64], index: 1, kind: input, shape index: {}]
  %s2 = inlined_call_operand.vmem [shape: f32[1,64], index: 2, kind: input, shape index: {}]
  %s3 = inlined_call_operand.hbm [shape: f32[2,1,64], index: 3, kind: output, shape index: {0}]
  %s4 = inlined_call_operand.hbm [shape: f32[2,1,64], index: 4, kind: output, shape index: {1}]
  %5 = xla_tuple %s3, %s4
  %s6 = sld [smem:[#allocation0]]
  $region53: #{tpu_custom_call.1} parent=0
    _
  %s8 = ssub.s32 1, %s6
  %s9 = scalar_select 0, %s8, %s6
  $region1: #{tpu_custom_call.1} parent=0
    #allocation2 [shape = 'u8[1024]{0}', space=vmem, size = 0x400, scoped, tag = 'output window, operand 0']
    #allocation3 [shape = 's32[2]{0}', space=sflag, size = 0x8, scoped, tag = 'scoped memory for tpu_custom_call.1']
    #allocation4 [shape = 'u8[1024]{0}', space=vmem, size = 0x400, scoped, tag = 'output window, operand 1']
    #allocation5 [shape = 's32[2]{0}', space=sflag, size = 0x8, scoped, tag = 'scoped memory for tpu_custom_call.1']
    %10 = vsyncpa [#allocation3], 0
    %s11 = scalar_lea.sflag [#allocation3], 1
    %12 = vsyncpa %s11, 0
    %13 = vsyncpa [#allocation5], 0
    %s14 = scalar_lea.sflag [#allocation5], 1
    %15 = vsyncpa %s14, 0
    loop: start=0, step=1, limit=4
    $region2: #{tpu_custom_call.1} parent=1 // loop_pre_header
      _
    $region3: #{tpu_custom_call.1} parent=1 // loop_header
      %s17 = sphi 0, %s21
      %p18 = scmp.ge.s32.totalorder %s17, 4
      %s27 = sphi 0, %s29
      %s30 = sphi 0, %s27
      %s31 = sphi 0, %s30
      %s47 = sphi 0, %s31
      %s51 = sphi 0, %s51
      %s53 = sphi 0, %s51
      %s54 = sphi 0, %s53
      %s68 = sphi 0, %s54
      %s72 = sphi 0, %s72
      %s74 = sphi 0, %s72
      %s75 = sphi 0, %s74
      %s89 = sphi 0, %s75
      %s95 = sphi 0, %s97
      %s98 = sphi 0, %s95
      %s99 = sphi 0, %s98
      %s115 = sphi 0, %s99
      %s121 = sphi 0, %s123
      %s124 = sphi 0, %s121
      %s125 = sphi 0, %s124
      %s141 = sphi 0, %s125
    $region4: #{tpu_custom_call.1} parent=1 // loop_header_branch
      %20 = sbr.rel (%p18) target = $region8
    $region5: #{tpu_custom_call.1} parent=1 // loop_body
      %s22 = ssub.s32 %s17, 1
      %s23 = ssub.s32 %s17, 2
      %s24 = sadd.s32 %s17, 1
      %s25 = ssub.s32 %s17, %s24
      %p26 = scmp.eq.s32.totalorder %s25, 0
      %s28 = sadd.s32 %s27, 1
      %s29 = scalar_select %p26, %s27, %s28
      %p32 = pneg %p26
      %p33 = scmp.eq.s32.totalorder %s17, 1
      %p34 = por %p32, %p33
      %p35 = scmp.ne.s32.totalorder %s27, %s30
      %p36 = scmp.eq.s32.totalorder %s17, 0
      %p37 = por %p35, %p36
      %p38 = scmp.ne.s32.totalorder %s27, %s30
      %p39 = scmp.eq.s32.totalorder %s22, 1
      %p40 = por %p38, %p39
      %p41 = scmp.ne.s32.totalorder %s30, %s31
      %p42 = scmp.eq.s32.totalorder %s22, 0
      %p43 = por %p41, %p42
      %p44 = scmp.ne.s32.totalorder %s30, %s31
      %p45 = scmp.eq.s32.totalorder %s23, 1
      %p46 = por %p44, %p45
      %p48 = scmp.ne.s32.totalorder %s31, %s47
      %p49 = scmp.eq.s32.totalorder %s23, 0
      %p50 = por %p48, %p49
      %s52 = sadd.s32 %s51, 1
      %p55 = scmp.eq.s32.totalorder %s17, 1
      %p56 = scmp.ne.s32.totalorder %s51, %s53
      %p57 = scmp.eq.s32.totalorder %s17, 0
      %p58 = por %p56, %p57
      %p59 = scmp.ne.s32.totalorder %s51, %s53
      %p60 = scmp.eq.s32.totalorder %s22, 1
      %p61 = por %p59, %p60
      %p62 = scmp.ne.s32.totalorder %s53, %s54
      %p63 = scmp.eq.s32.totalorder %s22, 0
      %p64 = por %p62, %p63
      %p65 = scmp.ne.s32.totalorder %s53, %s54
      %p66 = scmp.eq.s32.totalorder %s23, 1
      %p67 = por %p65, %p66
      %p69 = scmp.ne.s32.totalorder %s54, %s68
      %p70 = scmp.eq.s32.totalorder %s23, 0
      %p71 = por %p69, %p70
      %s73 = sadd.s32 %s72, 1
      %p76 = scmp.eq.s32.totalorder %s17, 1
      %p77 = scmp.ne.s32.totalorder %s72, %s74
      %p78 = scmp.eq.s32.totalorder %s17, 0
      %p79 = por %p77, %p78
      %p80 = scmp.ne.s32.totalorder %s72, %s74
      %p81 = scmp.eq.s32.totalorder %s22, 1
      %p82 = por %p80, %p81
      %p83 = scmp.ne.s32.totalorder %s74, %s75
      %p84 = scmp.eq.s32.totalorder %s22, 0
      %p85 = por %p83, %p84
      %p86 = scmp.ne.s32.totalorder %s74, %s75
      %p87 = scmp.eq.s32.totalorder %s23, 1
      %p88 = por %p86, %p87
      %p90 = scmp.ne.s32.totalorder %s75, %s89
      %p91 = scmp.eq.s32.totalorder %s23, 0
      %p92 = por %p90, %p91
      %s93 = ssub.s32 %s17, %s24
      %p94 = scmp.eq.s32.totalorder %s93, 0
      %s96 = sadd.s32 %s95, 1
      %s97 = scalar_select %p94, %s95, %s96
      %p100 = pneg %p94
      %p101 = scmp.eq.s32.totalorder %s17, 1
      %p102 = por %p100, %p101
      %p103 = scmp.ne.s32.totalorder %s95, %s98
      %p104 = scmp.eq.s32.totalorder %s17, 0
      %p105 = por %p103, %p104
      %p106 = scmp.ne.s32.totalorder %s95, %s98
      %p107 = scmp.eq.s32.totalorder %s22, 1
      %p108 = por %p106, %p107
      %p109 = scmp.ne.s32.totalorder %s98, %s99
      %p110 = scmp.eq.s32.totalorder %s22, 0
      %p111 = por %p109, %p110
      %p112 = scmp.ne.s32.totalorder %s98, %s99
      %p113 = scmp.eq.s32.totalorder %s23, 1
      %p114 = por %p112, %p113
      %p116 = scmp.ne.s32.totalorder %s99, %s115
      %p117 = scmp.eq.s32.totalorder %s23, 0
      %p118 = por %p116, %p117
      %s119 = ssub.s32 %s17, %s24
      %p120 = scmp.eq.s32.totalorder %s119, 0
      %s122 = sadd.s32 %s121, 1
      %s123 = scalar_select %p120, %s121, %s122
      %p126 = pneg %p120
      %p127 = scmp.eq.s32.totalorder %s17, 1
      %p128 = por %p126, %p127
      %p129 = scmp.ne.s32.totalorder %s121, %s124
      %p130 = scmp.eq.s32.totalorder %s17, 0
      %p131 = por %p129, %p130
      %p132 = scmp.ne.s32.totalorder %s121, %s124
      %p133 = scmp.eq.s32.totalorder %s22, 1
      %p134 = por %p132, %p133
      %p135 = scmp.ne.s32.totalorder %s124, %s125
      %p136 = scmp.eq.s32.totalorder %s22, 0
      %p137 = por %p135, %p136
      %p138 = scmp.ne.s32.totalorder %s124, %s125
      %p139 = scmp.eq.s32.totalorder %s23, 1
      %p140 = por %p138, %p139
      %p142 = scmp.ne.s32.totalorder %s125, %s141
      %p143 = scmp.eq.s32.totalorder %s23, 0
      %p144 = por %p142, %p143
      %p145 = scmp.le.s32.totalorder 1, %s17
      %p146 = scmp.lt.s32.totalorder %s17, 3
      %p147 = pnand %p145, %p146
      %p148 = pneg %p147
      // Predicated region
      $region9: #{tpu_custom_call.1} parent=5 // pred_check
        _
      $region10: #{tpu_custom_call.1} parent=5 // pred_check_branch
        %150 = sbr.rel (%p147) target = $region12
      $region11: #{tpu_custom_call.1} parent=5 // pred_region
        %s151 = ssub.s32 %s17, 1
        // Predicated region
        $region13: #{tpu_custom_call.1} parent=11 // pred_check
          %p152 = pneg %p64
        $region14: #{tpu_custom_call.1} parent=11 // pred_check_branch
          %154 = sbr.rel (%p152) target = $region16
        $region15: #{tpu_custom_call.1} parent=11 // pred_region
          _
        $region16: #{tpu_custom_call.1} parent=11 // pred_fallthru
          _
        // Predicated region
        $region17: #{tpu_custom_call.1} parent=11 // pred_check
          %p155 = pneg %p85
        $region18: #{tpu_custom_call.1} parent=11 // pred_check_branch
          %157 = sbr.rel (%p155) target = $region20
        $region19: #{tpu_custom_call.1} parent=11 // pred_region
          _
        $region20: #{tpu_custom_call.1} parent=11 // pred_fallthru
          _
      $region12: #{tpu_custom_call.1} parent=5 // pred_fallthru
        _
      %p158 = scmp.lt.s32.totalorder %s17, 2
      // Predicated region
      $region21: #{tpu_custom_call.1} parent=5 // pred_check
        %p159 = pneg %p158
      $region22: #{tpu_custom_call.1} parent=5 // pred_check_branch
        %161 = sbr.rel (%p159) target = $region24
      $region23: #{tpu_custom_call.1} parent=5 // pred_region
        // Predicated region
        $region25: #{tpu_custom_call.1} parent=23 // pred_check
          %p162 = pneg %p37
        $region26: #{tpu_custom_call.1} parent=23 // pred_check_branch
          %164 = sbr.rel (%p162) target = $region28
        $region27: #{tpu_custom_call.1} parent=23 // pred_region
          %p165 = scmp.lt.s32.totalorder %s17, 1
          %s166 = scalar_select %p165, %s17, 1
          %s167 = smul.addr %s166, 54
          %s168 = smul.addr %s167, 8
          %s169 = scalar_lea.vmem %s0, %s168
        $region28: #{tpu_custom_call.1} parent=23 // pred_fallthru
          _
      $region24: #{tpu_custom_call.1} parent=5 // pred_fallthru
        _
      %p170 = scmp.le.s32.totalorder 1, %s17
      %p171 = scmp.lt.s32.totalorder %s17, 3
      %p172 = pnand %p170, %p171
      %p173 = pneg %p172
      // Predicated region
      $region29: #{tpu_custom_call.1} parent=5 // pred_check
        _
      $region30: #{tpu_custom_call.1} parent=5 // pred_check_branch
        %175 = sbr.rel (%p172) target = $region32
      $region31: #{tpu_custom_call.1} parent=5 // pred_region
        %s176 = ssub.s32 %s17, 1
        %p177 = scmp.lt.s32.totalorder %s22, 1
        %s178 = scalar_select %p177, %s22, 1
        %s179 = smul.addr %s178, 54
        %s180 = smul.addr %s179, 8
        %s181 = scalar_lea.vmem %s0, %s180
        %p182 = pneg %p43
        %p183 = pneg %p40
        %p184 = pneg %p64
        %p185 = pneg %p61
        %p186 = pneg %p85
        %p187 = pneg %p82
        %p188 = pneg %p111
        %p189 = pneg %p108
        %s190 = sand.u32 %s98, 1
        %s191 = scalar_lea.sflag [#allocation3], %s190
        %s192 = sand.u32 %s98, 1
        %s193 = scalar_lea.vmem [#allocation2], %s192
        %p194 = pneg %p137
        %p195 = pneg %p134
        %s196 = sand.u32 %s124, 1
        %s197 = scalar_lea.sflag [#allocation5], %s196
        %s198 = sand.u32 %s124, 1
        %s199 = scalar_lea.vmem [#allocation4], %s198
        %p200 = scmp.lt.s32.totalorder %s22, 1
        %s201 = scalar_select %p200, %s22, 1
        %s202 = smul.addr %s201, 54
        %s203 = smul.addr %s202, 8
        %s204 = scalar_lea.vmem %s0, %s203
        %v205 = vld [vmem:[%s204] sm:$0xff]
        %v206 = vld [vmem:[%s204 + $0x8] sm:$0xff]
        %v207 = vld [vmem:[%s204 + $0x18] sm:$0xff]
        %v208 = vld [vmem:[%s204 + $0x20] sm:$0xff]
        %v209 = vld [vmem:[%s204 + $0x30] sm:$0xff]
        %v210 = vld [vmem:[%s204 + $0x38] sm:$0xff]
        %v211 = vld [vmem:[%s204 + $0x48] sm:$0xff]
        %v212 = vld [vmem:[%s204 + $0x50] sm:$0xff]
        %v213 = vld [vmem:[%s204 + $0x60] sm:$0xff]
        %v214 = vld [vmem:[%s204 + $0x68] sm:$0xff]
        %v215 = vld [vmem:[%s204 + $0x78] sm:$0xff]
        %v216 = vld [vmem:[%s204 + $0x80] sm:$0xff]
        %v217 = vld [vmem:[%s204 + $0x90] sm:$0xff]
        %v218 = vld [vmem:[%s204 + $0x98] sm:$0xff]
        %v219 = vld [vmem:[%s204 + $0xa8] sm:$0xff]
        %v220 = vld [vmem:[%s204 + $0xb0] sm:$0xff]
        %v221 = vld [vmem:[%s204 + $0xc0] sm:$0xff]
        %v222 = vld [vmem:[%s204 + $0xc8] sm:$0xff]
        %v223 = vld [vmem:[%s204 + $0xd8] sm:$0xff]
        %v224 = vld [vmem:[%s204 + $0xe0] sm:$0xff]
        %v225 = vld [vmem:[%s204 + $0xf0] sm:$0xff]
        %v226 = vld [vmem:[%s204 + $0xf8] sm:$0xff]
        %v227 = vld [vmem:[%s204 + $0x108] sm:$0xff]
        %v228 = vld [vmem:[%s204 + $0x110] sm:$0xff]
        %v229 = vld [vmem:[%s204 + $0x120] sm:$0xff]
        %v230 = vld [vmem:[%s204 + $0x128] sm:$0xff]
        %v231 = vld [vmem:[%s204 + $0x138] sm:$0xff]
        %v232 = vld [vmem:[%s204 + $0x140] sm:$0xff]
        %v233 = vld [vmem:[%s204 + $0x150] sm:$0xff]
        %v234 = vld [vmem:[%s204 + $0x158] sm:$0xff]
        %v235 = vld [vmem:[%s204 + $0x168] sm:$0xff]
        %v236 = vld [vmem:[%s204 + $0x170] sm:$0xff]
        %v237 = vld [vmem:[%s1] sm:$0xff]
        %v238 = vld [vmem:[%s1 + $0x8] sm:$0xff]
        %v239 = vld [vmem:[%s1 + $0x10] sm:$0xff]
        %v240 = vld [vmem:[%s1 + $0x18] sm:$0xff]
        %v241 = vld [vmem:[%s1 + $0x20] sm:$0xff]
        %v242 = vld [vmem:[%s1 + $0x28] sm:$0xff]
        %v243 = vld [vmem:[%s1 + $0x30] sm:$0xff]
        %v244 = vld [vmem:[%s1 + $0x38] sm:$0xff]
        %v245 = vld [vmem:[%s204 + $0x1] sm:$0xff]
        %v246 = vld [vmem:[%s204 + $0x9] sm:$0xff]
        %v247 = vld [vmem:[%s204 + $0x19] sm:$0xff]
        %v248 = vld [vmem:[%s204 + $0x21] sm:$0xff]
        %v249 = vld [vmem:[%s204 + $0x31] sm:$0xff]
        %v250 = vld [vmem:[%s204 + $0x39] sm:$0xff]
        %v251 = vld [vmem:[%s204 + $0x49] sm:$0xff]
        %v252 = vld [vmem:[%s204 + $0x51] sm:$0xff]
        %v253 = vld [vmem:[%s204 + $0x61] sm:$0xff]
        %v254 = vld [vmem:[%s204 + $0x69] sm:$0xff]
        %v255 = vld [vmem:[%s204 + $0x79] sm:$0xff]
        %v256 = vld [vmem:[%s204 + $0x81] sm:$0xff]
        %v257 = vld [vmem:[%s204 + $0x91] sm:$0xff]
        %v258 = vld [vmem:[%s204 + $0x99] sm:$0xff]
        %v259 = vld [vmem:[%s204 + $0xa9] sm:$0xff]
        %v260 = vld [vmem:[%s204 + $0xb1] sm:$0xff]
        %v261 = vld [vmem:[%s204 + $0xc1] sm:$0xff]
        %v262 = vld [vmem:[%s204 + $0xc9] sm:$0xff]
        %v263 = vld [vmem:[%s204 + $0xd9] sm:$0xff]
        %v264 = vld [vmem:[%s204 + $0xe1] sm:$0xff]
        %v265 = vld [vmem:[%s204 + $0xf1] sm:$0xff]
        %v266 = vld [vmem:[%s204 + $0xf9] sm:$0xff]
        %v267 = vld [vmem:[%s204 + $0x109] sm:$0xff]
        %v268 = vld [vmem:[%s204 + $0x111] sm:$0xff]
        %v269 = vld [vmem:[%s204 + $0x121] sm:$0xff]
        %v270 = vld [vmem:[%s204 + $0x129] sm:$0xff]
        %v271 = vld [vmem:[%s204 + $0x139] sm:$0xff]
        %v272 = vld [vmem:[%s204 + $0x141] sm:$0xff]
        %v273 = vld [vmem:[%s204 + $0x151] sm:$0xff]
        %v274 = vld [vmem:[%s204 + $0x159] sm:$0xff]
        %v275 = vld [vmem:[%s204 + $0x169] sm:$0xff]
        %v276 = vld [vmem:[%s204 + $0x171] sm:$0xff]
        %s277 = scalar_lea.vmem %s1, 64
        %v278 = vld [vmem:[%s277] sm:$0xff]
        %v279 = vld [vmem:[%s277 + $0x8] sm:$0xff]
        %v280 = vld [vmem:[%s277 + $0x10] sm:$0xff]
        %v281 = vld [vmem:[%s277 + $0x18] sm:$0xff]
        %v282 = vld [vmem:[%s277 + $0x20] sm:$0xff]
        %v283 = vld [vmem:[%s277 + $0x28] sm:$0xff]
        %v284 = vld [vmem:[%s277 + $0x30] sm:$0xff]
        %v285 = vld [vmem:[%s277 + $0x38] sm:$0xff]
        %vm286 = vcmask 523264
        %v288 = vsel %vm286, %v245, 0
        %v291 = vsel %vm286, %v246, 0
        %v294 = vsel %vm286, %v247, 0
        %v297 = vsel %vm286, %v248, 0
        %v300 = vsel %vm286, %v249, 0
        %v303 = vsel %vm286, %v250, 0
        %v306 = vsel %vm286, %v251, 0
        %v309 = vsel %vm286, %v252, 0
        %v312 = vsel %vm286, %v253, 0
        %v315 = vsel %vm286, %v254, 0
        %v318 = vsel %vm286, %v255, 0
        %v321 = vsel %vm286, %v256, 0
        %v324 = vsel %vm286, %v257, 0
        %v327 = vsel %vm286, %v258, 0
        %v330 = vsel %vm286, %v259, 0
        %v333 = vsel %vm286, %v260, 0
        %v336 = vsel %vm286, %v261, 0
        %v339 = vsel %vm286, %v262, 0
        %v342 = vsel %vm286, %v263, 0
        %v345 = vsel %vm286, %v264, 0
        %v348 = vsel %vm286, %v265, 0
        %v351 = vsel %vm286, %v266, 0
        %v354 = vsel %vm286, %v267, 0
        %v357 = vsel %vm286, %v268, 0
        %v360 = vsel %vm286, %v269, 0
        %v363 = vsel %vm286, %v270, 0
        %v366 = vsel %vm286, %v271, 0
        %v369 = vsel %vm286, %v272, 0
        %v372 = vsel %vm286, %v273, 0
        %v375 = vsel %vm286, %v274, 0
        %v378 = vsel %vm286, %v275, 0
        %v381 = vsel %vm286, %v276, 0
        %383 = vmatpush.msra.mxu0 0.0
        %384 = vmatpush.msra.mxu0 0.0
        %385 = vmatpush.msra.mxu0 0.0
        %386 = vmatpush.msra.mxu0 0.0
        %387 = vmatpush.msra.mxu0 0.0
        %388 = vmatpush.msra.mxu0 0.0
        %389 = vmatpush.msra.mxu0 0.0
        %390 = vmatpush.msra.mxu0 0.0
        %391 = vmatpush.msra.mxu0 %v285
        %392 = vmatpush.msra.mxu0 %v284
        %393 = vmatpush.msra.mxu0 %v283
        %394 = vmatpush.msra.mxu0 %v282
        %395 = vmatpush.msra.mxu0 %v281
        %396 = vmatpush.msra.mxu0 %v280
        %397 = vmatpush.msra.mxu0 %v279
        %398 = vmatpush.msra.mxu0 %v278
        %399 = vmatmul.f32.gmra.mxu0 %v288
        %v400 = vpop.f32.mrf.mxu0
        %v401 = vadd.f32 0.0, %v400
        %402 = vmatmul.f32.gmra.mxu0 %v291
        %v403 = vpop.f32.mrf.mxu0
        %v404 = vadd.f32 0.0, %v403
        %405 = vmatmul.f32.gmra.mxu0 %v294
        %v406 = vpop.f32.mrf.mxu0
        %v407 = vadd.f32 0.0, %v406
        %408 = vmatmul.f32.gmra.mxu0 %v297
        %v409 = vpop.f32.mrf.mxu0
        %v410 = vadd.f32 0.0, %v409
        %411 = vmatmul.f32.gmra.mxu0 %v300
        %v412 = vpop.f32.mrf.mxu0
        %v413 = vadd.f32 0.0, %v412
        %414 = vmatmul.f32.gmra.mxu0 %v303
        %v415 = vpop.f32.mrf.mxu0
        %v416 = vadd.f32 0.0, %v415
        %417 = vmatmul.f32.gmra.mxu0 %v306
        %v418 = vpop.f32.mrf.mxu0
        %v419 = vadd.f32 0.0, %v418
        %420 = vmatmul.f32.gmra.mxu0 %v309
        %v421 = vpop.f32.mrf.mxu0
        %v422 = vadd.f32 0.0, %v421
        %423 = vmatmul.f32.gmra.mxu0 %v312
        %v424 = vpop.f32.mrf.mxu0
        %v425 = vadd.f32 0.0, %v424
        %426 = vmatmul.f32.gmra.mxu0 %v315
        %v427 = vpop.f32.mrf.mxu0
        %v428 = vadd.f32 0.0, %v427
        %429 = vmatmul.f32.gmra.mxu0 %v318
        %v430 = vpop.f32.mrf.mxu0
        %v431 = vadd.f32 0.0, %v430
        %432 = vmatmul.f32.gmra.mxu0 %v321
        %v433 = vpop.f32.mrf.mxu0
        %v434 = vadd.f32 0.0, %v433
        %435 = vmatmul.f32.gmra.mxu0 %v324
        %v436 = vpop.f32.mrf.mxu0
        %v437 = vadd.f32 0.0, %v436
        %438 = vmatmul.f32.gmra.mxu0 %v327
        %v439 = vpop.f32.mrf.mxu0
        %v440 = vadd.f32 0.0, %v439
        %441 = vmatmul.f32.gmra.mxu0 %v330
        %v442 = vpop.f32.mrf.mxu0
        %v443 = vadd.f32 0.0, %v442
        %444 = vmatmul.f32.gmra.mxu0 %v333
        %v445 = vpop.f32.mrf.mxu0
        %v446 = vadd.f32 0.0, %v445
        %447 = vmatmul.f32.gmra.mxu0 %v336
        %v448 = vpop.f32.mrf.mxu0
        %v449 = vadd.f32 0.0, %v448
        %450 = vmatmul.f32.gmra.mxu0 %v339
        %v451 = vpop.f32.mrf.mxu0
        %v452 = vadd.f32 0.0, %v451
        %453 = vmatmul.f32.gmra.mxu0 %v342
        %v454 = vpop.f32.mrf.mxu0
        %v455 = vadd.f32 0.0, %v454
        %456 = vmatmul.f32.gmra.mxu0 %v345
        %v457 = vpop.f32.mrf.mxu0
        %v458 = vadd.f32 0.0, %v457
        %459 = vmatmul.f32.gmra.mxu0 %v348
        %v460 = vpop.f32.mrf.mxu0
        %v461 = vadd.f32 0.0, %v460
        %462 = vmatmul.f32.gmra.mxu0 %v351
        %v463 = vpop.f32.mrf.mxu0
        %v464 = vadd.f32 0.0, %v463
        %465 = vmatmul.f32.gmra.mxu0 %v354
        %v466 = vpop.f32.mrf.mxu0
        %v467 = vadd.f32 0.0, %v466
        %468 = vmatmul.f32.gmra.mxu0 %v357
        %v469 = vpop.f32.mrf.mxu0
        %v470 = vadd.f32 0.0, %v469
        %471 = vmatmul.f32.gmra.mxu0 %v360
        %v472 = vpop.f32.mrf.mxu0
        %v473 = vadd.f32 0.0, %v472
        %474 = vmatmul.f32.gmra.mxu0 %v363
        %v475 = vpop.f32.mrf.mxu0
        %v476 = vadd.f32 0.0, %v475
        %477 = vmatmul.f32.gmra.mxu0 %v366
        %v478 = vpop.f32.mrf.mxu0
        %v479 = vadd.f32 0.0, %v478
        %480 = vmatmul.f32.gmra.mxu0 %v369
        %v481 = vpop.f32.mrf.mxu0
        %v482 = vadd.f32 0.0, %v481
        %483 = vmatmul.f32.gmra.mxu0 %v372
        %v484 = vpop.f32.mrf.mxu0
        %v485 = vadd.f32 0.0, %v484
        %486 = vmatmul.f32.gmra.mxu0 %v375
        %v487 = vpop.f32.mrf.mxu0
        %v488 = vadd.f32 0.0, %v487
        %489 = vmatmul.f32.gmra.mxu0 %v378
        %v490 = vpop.f32.mrf.mxu0
        %v491 = vadd.f32 0.0, %v490
        %492 = vmatmul.f32.gmra.mxu0 %v381
        %v493 = vpop.f32.mrf.mxu0
        %v494 = vadd.f32 0.0, %v493
        %495 = vdwg.mxu0
        %v497 = vsel %vm286, %v205, 0
        %v500 = vsel %vm286, %v206, 0
        %v503 = vsel %vm286, %v207, 0
        %v506 = vsel %vm286, %v208, 0
        %v509 = vsel %vm286, %v209, 0
        %v512 = vsel %vm286, %v210, 0
        %v515 = vsel %vm286, %v211, 0
        %v518 = vsel %vm286, %v212, 0
        %v521 = vsel %vm286, %v213, 0
        %v524 = vsel %vm286, %v214, 0
        %v527 = vsel %vm286, %v215, 0
        %v530 = vsel %vm286, %v216, 0
        %v533 = vsel %vm286, %v217, 0
        %v536 = vsel %vm286, %v218, 0
        %v539 = vsel %vm286, %v219, 0
        %v542 = vsel %vm286, %v220, 0
        %v545 = vsel %vm286, %v221, 0
        %v548 = vsel %vm286, %v222, 0
        %v551 = vsel %vm286, %v223, 0
        %v554 = vsel %vm286, %v224, 0
        %v557 = vsel %vm286, %v225, 0
        %v560 = vsel %vm286, %v226, 0
        %v563 = vsel %vm286, %v227, 0
        %v566 = vsel %vm286, %v228, 0
        %v569 = vsel %vm286, %v229, 0
        %v572 = vsel %vm286, %v230, 0
        %v575 = vsel %vm286, %v231, 0
        %v578 = vsel %vm286, %v232, 0
        %v581 = vsel %vm286, %v233, 0
        %v584 = vsel %vm286, %v234, 0
        %v587 = vsel %vm286, %v235, 0
        %v590 = vsel %vm286, %v236, 0
        %592 = vmatpush.msra.mxu0 0.0
        %593 = vmatpush.msra.mxu0 0.0
        %594 = vmatpush.msra.mxu0 0.0
        %595 = vmatpush.msra.mxu0 0.0
        %596 = vmatpush.msra.mxu0 0.0
        %597 = vmatpush.msra.mxu0 0.0
        %598 = vmatpush.msra.mxu0 0.0
        %599 = vmatpush.msra.mxu0 0.0
        %600 = vmatpush.msra.mxu0 %v244
        %601 = vmatpush.msra.mxu0 %v243
        %602 = vmatpush.msra.mxu0 %v242
        %603 = vmatpush.msra.mxu0 %v241
        %604 = vmatpush.msra.mxu0 %v240
        %605 = vmatpush.msra.mxu0 %v239
        %606 = vmatpush.msra.mxu0 %v238
        %607 = vmatpush.msra.mxu0 %v237
        %608 = vmatmul.f32.gmra.mxu0 %v497
        %v609 = vpop.f32.mrf.mxu0
        %v610 = vadd.f32 %v401, %v609
        %611 = vmatmul.f32.gmra.mxu0 %v500
        %v612 = vpop.f32.mrf.mxu0
        %v613 = vadd.f32 %v404, %v612
        %614 = vmatmul.f32.gmra.mxu0 %v503
        %v615 = vpop.f32.mrf.mxu0
        %v616 = vadd.f32 %v407, %v615
        %617 = vmatmul.f32.gmra.mxu0 %v506
        %v618 = vpop.f32.mrf.mxu0
        %v619 = vadd.f32 %v410, %v618
        %620 = vmatmul.f32.gmra.mxu0 %v509
        %v621 = vpop.f32.mrf.mxu0
        %v622 = vadd.f32 %v413, %v621
        %623 = vmatmul.f32.gmra.mxu0 %v512
        %v624 = vpop.f32.mrf.mxu0
        %v625 = vadd.f32 %v416, %v624
        %626 = vmatmul.f32.gmra.mxu0 %v515
        %v627 = vpop.f32.mrf.mxu0
        %v628 = vadd.f32 %v419, %v627
        %629 = vmatmul.f32.gmra.mxu0 %v518
        %v630 = vpop.f32.mrf.mxu0
        %v631 = vadd.f32 %v422, %v630
        %632 = vmatmul.f32.gmra.mxu0 %v521
        %v633 = vpop.f32.mrf.mxu0
        %v634 = vadd.f32 %v425, %v633
        %635 = vmatmul.f32.gmra.mxu0 %v524
        %v636 = vpop.f32.mrf.mxu0
        %v637 = vadd.f32 %v428, %v636
        %638 = vmatmul.f32.gmra.mxu0 %v527
        %v639 = vpop.f32.mrf.mxu0
        %v640 = vadd.f32 %v431, %v639
        %641 = vmatmul.f32.gmra.mxu0 %v530
        %v642 = vpop.f32.mrf.mxu0
        %v643 = vadd.f32 %v434, %v642
        %644 = vmatmul.f32.gmra.mxu0 %v533
        %v645 = vpop.f32.mrf.mxu0
        %v646 = vadd.f32 %v437, %v645
        %647 = vmatmul.f32.gmra.mxu0 %v536
        %v648 = vpop.f32.mrf.mxu0
        %v649 = vadd.f32 %v440, %v648
        %650 = vmatmul.f32.gmra.mxu0 %v539
        %v651 = vpop.f32.mrf.mxu0
        %v652 = vadd.f32 %v443, %v651
        %653 = vmatmul.f32.gmra.mxu0 %v542
        %v654 = vpop.f32.mrf.mxu0
        %v655 = vadd.f32 %v446, %v654
        %656 = vmatmul.f32.gmra.mxu0 %v545
        %v657 = vpop.f32.mrf.mxu0
        %v658 = vadd.f32 %v449, %v657
        %659 = vmatmul.f32.gmra.mxu0 %v548
        %v660 = vpop.f32.mrf.mxu0
        %v661 = vadd.f32 %v452, %v660
        %662 = vmatmul.f32.gmra.mxu0 %v551
        %v663 = vpop.f32.mrf.mxu0
        %v664 = vadd.f32 %v455, %v663
        %665 = vmatmul.f32.gmra.mxu0 %v554
        %v666 = vpop.f32.mrf.mxu0
        %v667 = vadd.f32 %v458, %v666
        %668 = vmatmul.f32.gmra.mxu0 %v557
        %v669 = vpop.f32.mrf.mxu0
        %v670 = vadd.f32 %v461, %v669
        %671 = vmatmul.f32.gmra.mxu0 %v560
        %v672 = vpop.f32.mrf.mxu0
        %v673 = vadd.f32 %v464, %v672
        %674 = vmatmul.f32.gmra.mxu0 %v563
        %v675 = vpop.f32.mrf.mxu0
        %v676 = vadd.f32 %v467, %v675
        %677 = vmatmul.f32.gmra.mxu0 %v566
        %v678 = vpop.f32.mrf.mxu0
        %v679 = vadd.f32 %v470, %v678
        %680 = vmatmul.f32.gmra.mxu0 %v569
        %v681 = vpop.f32.mrf.mxu0
        %v682 = vadd.f32 %v473, %v681
        %683 = vmatmul.f32.gmra.mxu0 %v572
        %v684 = vpop.f32.mrf.mxu0
        %v685 = vadd.f32 %v476, %v684
        %686 = vmatmul.f32.gmra.mxu0 %v575
        %v687 = vpop.f32.mrf.mxu0
        %v688 = vadd.f32 %v479, %v687
        %689 = vmatmul.f32.gmra.mxu0 %v578
        %v690 = vpop.f32.mrf.mxu0
        %v691 = vadd.f32 %v482, %v690
        %692 = vmatmul.f32.gmra.mxu0 %v581
        %v693 = vpop.f32.mrf.mxu0
        %v694 = vadd.f32 %v485, %v693
        %695 = vmatmul.f32.gmra.mxu0 %v584
        %v696 = vpop.f32.mrf.mxu0
        %v697 = vadd.f32 %v488, %v696
        %698 = vmatmul.f32.gmra.mxu0 %v587
        %v699 = vpop.f32.mrf.mxu0
        %v700 = vadd.f32 %v491, %v699
        %701 = vmatmul.f32.gmra.mxu0 %v590
        %v702 = vpop.f32.mrf.mxu0
        %v703 = vadd.f32 %v494, %v702
        %704 = vdwg.mxu0
        %v705 = vld [vmem:[%s204 + $0x2] sm:$0xff]
        %v706 = vld [vmem:[%s204 + $0xa] sm:$0xff]
        %v707 = vld [vmem:[%s204 + $0x1a] sm:$0xff]
        %v708 = vld [vmem:[%s204 + $0x22] sm:$0xff]
        %v709 = vld [vmem:[%s204 + $0x32] sm:$0xff]
        %v710 = vld [vmem:[%s204 + $0x3a] sm:$0xff]
        %v711 = vld [vmem:[%s204 + $0x4a] sm:$0xff]
        %v712 = vld [vmem:[%s204 + $0x52] sm:$0xff]
        %v713 = vld [vmem:[%s204 + $0x62] sm:$0xff]
        %v714 = vld [vmem:[%s204 + $0x6a] sm:$0xff]
        %v715 = vld [vmem:[%s204 + $0x7a] sm:$0xff]
        %v716 = vld [vmem:[%s204 + $0x82] sm:$0xff]
        %v717 = vld [vmem:[%s204 + $0x92] sm:$0xff]
        %v718 = vld [vmem:[%s204 + $0x9a] sm:$0xff]
        %v719 = vld [vmem:[%s204 + $0xaa] sm:$0xff]
        %v720 = vld [vmem:[%s204 + $0xb2] sm:$0xff]
        %v721 = vld [vmem:[%s204 + $0xc2] sm:$0xff]
        %v722 = vld [vmem:[%s204 + $0xca] sm:$0xff]
        %v723 = vld [vmem:[%s204 + $0xda] sm:$0xff]
        %v724 = vld [vmem:[%s204 + $0xe2] sm:$0xff]
        %v725 = vld [vmem:[%s204 + $0xf2] sm:$0xff]
        %v726 = vld [vmem:[%s204 + $0xfa] sm:$0xff]
        %v727 = vld [vmem:[%s204 + $0x10a] sm:$0xff]
        %v728 = vld [vmem:[%s204 + $0x112] sm:$0xff]
        %v729 = vld [vmem:[%s204 + $0x122] sm:$0xff]
        %v730 = vld [vmem:[%s204 + $0x12a] sm:$0xff]
        %v731 = vld [vmem:[%s204 + $0x13a] sm:$0xff]
        %v732 = vld [vmem:[%s204 + $0x142] sm:$0xff]
        %v733 = vld [vmem:[%s204 + $0x152] sm:$0xff]
        %v734 = vld [vmem:[%s204 + $0x15a] sm:$0xff]
        %v735 = vld [vmem:[%s204 + $0x16a] sm:$0xff]
        %v736 = vld [vmem:[%s204 + $0x172] sm:$0xff]
        %s737 = scalar_lea.vmem %s1, 128
        %v738 = vld [vmem:[%s737] sm:$0xff]
        %v739 = vld [vmem:[%s737 + $0x8] sm:$0xff]
        %v740 = vld [vmem:[%s737 + $0x10] sm:$0xff]
        %v741 = vld [vmem:[%s737 + $0x18] sm:$0xff]
        %v742 = vld [vmem:[%s737 + $0x20] sm:$0xff]
        %v743 = vld [vmem:[%s737 + $0x28] sm:$0xff]
        %v744 = vld [vmem:[%s737 + $0x30] sm:$0xff]
        %v745 = vld [vmem:[%s737 + $0x38] sm:$0xff]
        %v747 = vsel %vm286, %v705, 0
        %v750 = vsel %vm286, %v706, 0
        %v753 = vsel %vm286, %v707, 0
        %v756 = vsel %vm286, %v708, 0
        %v759 = vsel %vm286, %v709, 0
        %v762 = vsel %vm286, %v710, 0
        %v765 = vsel %vm286, %v711, 0
        %v768 = vsel %vm286, %v712, 0
        %v771 = vsel %vm286, %v713, 0
        %v774 = vsel %vm286, %v714, 0
        %v777 = vsel %vm286, %v715, 0
        %v780 = vsel %vm286, %v716, 0
        %v783 = vsel %vm286, %v717, 0
        %v786 = vsel %vm286, %v718, 0
        %v789 = vsel %vm286, %v719, 0
        %v792 = vsel %vm286, %v720, 0
        %v795 = vsel %vm286, %v721, 0
        %v798 = vsel %vm286, %v722, 0
        %v801 = vsel %vm286, %v723, 0
        %v804 = vsel %vm286, %v724, 0
        %v807 = vsel %vm286, %v725, 0
        %v810 = vsel %vm286, %v726, 0
        %v813 = vsel %vm286, %v727, 0
        %v816 = vsel %vm286, %v728, 0
        %v819 = vsel %vm286, %v729, 0
        %v822 = vsel %vm286, %v730, 0
        %v825 = vsel %vm286, %v731, 0
        %v828 = vsel %vm286, %v732, 0
        %v831 = vsel %vm286, %v733, 0
        %v834 = vsel %vm286, %v734, 0
        %v837 = vsel %vm286, %v735, 0
        %v840 = vsel %vm286, %v736, 0
        %842 = vmatpush.msra.mxu0 0.0
        %843 = vmatpush.msra.mxu0 0.0
        %844 = vmatpush.msra.mxu0 0.0
        %845 = vmatpush.msra.mxu0 0.0
        %846 = vmatpush.msra.mxu0 0.0
        %847 = vmatpush.msra.mxu0 0.0
        %848 = vmatpush.msra.mxu0 0.0
        %849 = vmatpush.msra.mxu0 0.0
        %850 = vmatpush.msra.mxu0 %v745
        %851 = vmatpush.msra.mxu0 %v744
        %852 = vmatpush.msra.mxu0 %v743
        %853 = vmatpush.msra.mxu0 %v742
        %854 = vmatpush.msra.mxu0 %v741
        %855 = vmatpush.msra.mxu0 %v740
        %856 = vmatpush.msra.mxu0 %v739
        %857 = vmatpush.msra.mxu0 %v738
        %858 = vmatmul.f32.gmra.mxu0 %v747
        %v859 = vpop.f32.mrf.mxu0
        %v860 = vadd.f32 0.0, %v859
        %861 = vmatmul.f32.gmra.mxu0 %v750
        %v862 = vpop.f32.mrf.mxu0
        %v863 = vadd.f32 0.0, %v862
        %864 = vmatmul.f32.gmra.mxu0 %v753
        %v865 = vpop.f32.mrf.mxu0
        %v866 = vadd.f32 0.0, %v865
        %867 = vmatmul.f32.gmra.mxu0 %v756
        %v868 = vpop.f32.mrf.mxu0
        %v869 = vadd.f32 0.0, %v868
        %870 = vmatmul.f32.gmra.mxu0 %v759
        %v871 = vpop.f32.mrf.mxu0
        %v872 = vadd.f32 0.0, %v871
        %873 = vmatmul.f32.gmra.mxu0 %v762
        %v874 = vpop.f32.mrf.mxu0
        %v875 = vadd.f32 0.0, %v874
        %876 = vmatmul.f32.gmra.mxu0 %v765
        %v877 = vpop.f32.mrf.mxu0
        %v878 = vadd.f32 0.0, %v877
        %879 = vmatmul.f32.gmra.mxu0 %v768
        %v880 = vpop.f32.mrf.mxu0
        %v881 = vadd.f32 0.0, %v880
        %882 = vmatmul.f32.gmra.mxu0 %v771
        %v883 = vpop.f32.mrf.mxu0
        %v884 = vadd.f32 0.0, %v883
        %885 = vmatmul.f32.gmra.mxu0 %v774
        %v886 = vpop.f32.mrf.mxu0
        %v887 = vadd.f32 0.0, %v886
        %888 = vmatmul.f32.gmra.mxu0 %v777
        %v889 = vpop.f32.mrf.mxu0
        %v890 = vadd.f32 0.0, %v889
        %891 = vmatmul.f32.gmra.mxu0 %v780
        %v892 = vpop.f32.mrf.mxu0
        %v893 = vadd.f32 0.0, %v892
        %894 = vmatmul.f32.gmra.mxu0 %v783
        %v895 = vpop.f32.mrf.mxu0
        %v896 = vadd.f32 0.0, %v895
        %897 = vmatmul.f32.gmra.mxu0 %v786
        %v898 = vpop.f32.mrf.mxu0
        %v899 = vadd.f32 0.0, %v898
        %900 = vmatmul.f32.gmra.mxu0 %v789
        %v901 = vpop.f32.mrf.mxu0
        %v902 = vadd.f32 0.0, %v901
        %903 = vmatmul.f32.gmra.mxu0 %v792
        %v904 = vpop.f32.mrf.mxu0
        %v905 = vadd.f32 0.0, %v904
        %906 = vmatmul.f32.gmra.mxu0 %v795
        %v907 = vpop.f32.mrf.mxu0
        %v908 = vadd.f32 0.0, %v907
        %909 = vmatmul.f32.gmra.mxu0 %v798
        %v910 = vpop.f32.mrf.mxu0
        %v911 = vadd.f32 0.0, %v910
        %912 = vmatmul.f32.gmra.mxu0 %v801
        %v913 = vpop.f32.mrf.mxu0
        %v914 = vadd.f32 0.0, %v913
        %915 = vmatmul.f32.gmra.mxu0 %v804
        %v916 = vpop.f32.mrf.mxu0
        %v917 = vadd.f32 0.0, %v916
        %918 = vmatmul.f32.gmra.mxu0 %v807
        %v919 = vpop.f32.mrf.mxu0
        %v920 = vadd.f32 0.0, %v919
        %921 = vmatmul.f32.gmra.mxu0 %v810
        %v922 = vpop.f32.mrf.mxu0
        %v923 = vadd.f32 0.0, %v922
        %924 = vmatmul.f32.gmra.mxu0 %v813
        %v925 = vpop.f32.mrf.mxu0
        %v926 = vadd.f32 0.0, %v925
        %927 = vmatmul.f32.gmra.mxu0 %v816
        %v928 = vpop.f32.mrf.mxu0
        %v929 = vadd.f32 0.0, %v928
        %930 = vmatmul.f32.gmra.mxu0 %v819
        %v931 = vpop.f32.mrf.mxu0
        %v932 = vadd.f32 0.0, %v931
        %933 = vmatmul.f32.gmra.mxu0 %v822
        %v934 = vpop.f32.mrf.mxu0
        %v935 = vadd.f32 0.0, %v934
        %936 = vmatmul.f32.gmra.mxu0 %v825
        %v937 = vpop.f32.mrf.mxu0
        %v938 = vadd.f32 0.0, %v937
        %939 = vmatmul.f32.gmra.mxu0 %v828
        %v940 = vpop.f32.mrf.mxu0
        %v941 = vadd.f32 0.0, %v940
        %942 = vmatmul.f32.gmra.mxu0 %v831
        %v943 = vpop.f32.mrf.mxu0
        %v944 = vadd.f32 0.0, %v943
        %945 = vmatmul.f32.gmra.mxu0 %v834
        %v946 = vpop.f32.mrf.mxu0
        %v947 = vadd.f32 0.0, %v946
        %948 = vmatmul.f32.gmra.mxu0 %v837
        %v949 = vpop.f32.mrf.mxu0
        %v950 = vadd.f32 0.0, %v949
        %951 = vmatmul.f32.gmra.mxu0 %v840
        %v952 = vpop.f32.mrf.mxu0
        %v953 = vadd.f32 0.0, %v952
        %954 = vdwg.mxu0
        %v955 = vadd.f32 %v610, %v860
        %v956 = vadd.f32 %v613, %v863
        %v957 = vadd.f32 %v616, %v866
        %v958 = vadd.f32 %v619, %v869
        %v959 = vadd.f32 %v622, %v872
        %v960 = vadd.f32 %v625, %v875
        %v961 = vadd.f32 %v628, %v878
        %v962 = vadd.f32 %v631, %v881
        %v963 = vadd.f32 %v634, %v884
        %v964 = vadd.f32 %v637, %v887
        %v965 = vadd.f32 %v640, %v890
        %v966 = vadd.f32 %v643, %v893
        %v967 = vadd.f32 %v646, %v896
        %v968 = vadd.f32 %v649, %v899
        %v969 = vadd.f32 %v652, %v902
        %v970 = vadd.f32 %v655, %v905
        %v971 = vadd.f32 %v658, %v908
        %v972 = vadd.f32 %v661, %v911
        %v973 = vadd.f32 %v664, %v914
        %v974 = vadd.f32 %v667, %v917
        %v975 = vadd.f32 %v670, %v920
        %v976 = vadd.f32 %v673, %v923
        %v977 = vadd.f32 %v676, %v926
        %v978 = vadd.f32 %v679, %v929
        %v979 = vadd.f32 %v682, %v932
        %v980 = vadd.f32 %v685, %v935
        %v981 = vadd.f32 %v688, %v938
        %v982 = vadd.f32 %v691, %v941
        %v983 = vadd.f32 %v694, %v944
        %v984 = vadd.f32 %v697, %v947
        %v985 = vadd.f32 %v700, %v950
        %v986 = vadd.f32 %v703, %v953
        %s987 = scalar_lea.vmem %s204, 24
        %v988 = vld [vmem:[%s987] sm:$0xff]
        %v989 = vld [vmem:[%s987 + $0x8] sm:$0xff]
        %v990 = vld [vmem:[%s987 + $0x18] sm:$0xff]
        %v991 = vld [vmem:[%s987 + $0x20] sm:$0xff]
        %v992 = vld [vmem:[%s987 + $0x30] sm:$0xff]
        %v993 = vld [vmem:[%s987 + $0x38] sm:$0xff]
        %v994 = vld [vmem:[%s987 + $0x48] sm:$0xff]
        %v995 = vld [vmem:[%s987 + $0x50] sm:$0xff]
        %v996 = vld [vmem:[%s987 + $0x60] sm:$0xff]
        %v997 = vld [vmem:[%s987 + $0x68] sm:$0xff]
        %v998 = vld [vmem:[%s987 + $0x78] sm:$0xff]
        %v999 = vld [vmem:[%s987 + $0x80] sm:$0xff]
        %v1000 = vld [vmem:[%s987 + $0x90] sm:$0xff]
        %v1001 = vld [vmem:[%s987 + $0x98] sm:$0xff]
        %v1002 = vld [vmem:[%s987 + $0xa8] sm:$0xff]
        %v1003 = vld [vmem:[%s987 + $0xb0] sm:$0xff]
        %v1004 = vld [vmem:[%s987 + $0xc0] sm:$0xff]
        %v1005 = vld [vmem:[%s987 + $0xc8] sm:$0xff]
        %v1006 = vld [vmem:[%s987 + $0xd8] sm:$0xff]
        %v1007 = vld [vmem:[%s987 + $0xe0] sm:$0xff]
        %v1008 = vld [vmem:[%s987 + $0xf0] sm:$0xff]
        %v1009 = vld [vmem:[%s987 + $0xf8] sm:$0xff]
        %v1010 = vld [vmem:[%s987 + $0x108] sm:$0xff]
        %v1011 = vld [vmem:[%s987 + $0x110] sm:$0xff]
        %v1012 = vld [vmem:[%s987 + $0x120] sm:$0xff]
        %v1013 = vld [vmem:[%s987 + $0x128] sm:$0xff]
        %v1014 = vld [vmem:[%s987 + $0x138] sm:$0xff]
        %v1015 = vld [vmem:[%s987 + $0x140] sm:$0xff]
        %v1016 = vld [vmem:[%s987 + $0x150] sm:$0xff]
        %v1017 = vld [vmem:[%s987 + $0x158] sm:$0xff]
        %v1018 = vld [vmem:[%s987 + $0x168] sm:$0xff]
        %v1019 = vld [vmem:[%s987 + $0x170] sm:$0xff]
        %s1020 = scalar_lea.vmem %s1, 192
        %v1021 = vld [vmem:[%s1020] sm:$0xff]
        %v1022 = vld [vmem:[%s1020 + $0x8] sm:$0xff]
        %v1023 = vld [vmem:[%s1020 + $0x10] sm:$0xff]
        %v1024 = vld [vmem:[%s1020 + $0x18] sm:$0xff]
        %v1025 = vld [vmem:[%s1020 + $0x20] sm:$0xff]
        %v1026 = vld [vmem:[%s1020 + $0x28] sm:$0xff]
        %v1027 = vld [vmem:[%s1020 + $0x30] sm:$0xff]
        %v1028 = vld [vmem:[%s1020 + $0x38] sm:$0xff]
        %v1030 = vsel %vm286, %v988, 0
        %v1033 = vsel %vm286, %v989, 0
        %v1036 = vsel %vm286, %v990, 0
        %v1039 = vsel %vm286, %v991, 0
        %v1042 = vsel %vm286, %v992, 0
        %v1045 = vsel %vm286, %v993, 0
        %v1048 = vsel %vm286, %v994, 0
        %v1051 = vsel %vm286, %v995, 0
        %v1054 = vsel %vm286, %v996, 0
        %v1057 = vsel %vm286, %v997, 0
        %v1060 = vsel %vm286, %v998, 0
        %v1063 = vsel %vm286, %v999, 0
        %v1066 = vsel %vm286, %v1000, 0
        %v1069 = vsel %vm286, %v1001, 0
        %v1072 = vsel %vm286, %v1002, 0
        %v1075 = vsel %vm286, %v1003, 0
        %v1078 = vsel %vm286, %v1004, 0
        %v1081 = vsel %vm286, %v1005, 0
        %v1084 = vsel %vm286, %v1006, 0
        %v1087 = vsel %vm286, %v1007, 0
        %v1090 = vsel %vm286, %v1008, 0
        %v1093 = vsel %vm286, %v1009, 0
        %v1096 = vsel %vm286, %v1010, 0
        %v1099 = vsel %vm286, %v1011, 0
        %v1102 = vsel %vm286, %v1012, 0
        %v1105 = vsel %vm286, %v1013, 0
        %v1108 = vsel %vm286, %v1014, 0
        %v1111 = vsel %vm286, %v1015, 0
        %v1114 = vsel %vm286, %v1016, 0
        %v1117 = vsel %vm286, %v1017, 0
        %v1120 = vsel %vm286, %v1018, 0
        %v1123 = vsel %vm286, %v1019, 0
        %1125 = vmatpush.msra.mxu0 0.0
        %1126 = vmatpush.msra.mxu0 0.0
        %1127 = vmatpush.msra.mxu0 0.0
        %1128 = vmatpush.msra.mxu0 0.0
        %1129 = vmatpush.msra.mxu0 0.0
        %1130 = vmatpush.msra.mxu0 0.0
        %1131 = vmatpush.msra.mxu0 0.0
        %1132 = vmatpush.msra.mxu0 0.0
        %1133 = vmatpush.msra.mxu0 %v1028
        %1134 = vmatpush.msra.mxu0 %v1027
        %1135 = vmatpush.msra.mxu0 %v1026
        %1136 = vmatpush.msra.mxu0 %v1025
        %1137 = vmatpush.msra.mxu0 %v1024
        %1138 = vmatpush.msra.mxu0 %v1023
        %1139 = vmatpush.msra.mxu0 %v1022
        %1140 = vmatpush.msra.mxu0 %v1021
        %1141 = vmatmul.f32.gmra.mxu0 %v1030
        %v1142 = vpop.f32.mrf.mxu0
        %v1143 = vadd.f32 0.0, %v1142
        %1144 = vmatmul.f32.gmra.mxu0 %v1033
        %v1145 = vpop.f32.mrf.mxu0
        %v1146 = vadd.f32 0.0, %v1145
        %1147 = vmatmul.f32.gmra.mxu0 %v1036
        %v1148 = vpop.f32.mrf.mxu0
        %v1149 = vadd.f32 0.0, %v1148
        %1150 = vmatmul.f32.gmra.mxu0 %v1039
        %v1151 = vpop.f32.mrf.mxu0
        %v1152 = vadd.f32 0.0, %v1151
        %1153 = vmatmul.f32.gmra.mxu0 %v1042
        %v1154 = vpop.f32.mrf.mxu0
        %v1155 = vadd.f32 0.0, %v1154
        %1156 = vmatmul.f32.gmra.mxu0 %v1045
        %v1157 = vpop.f32.mrf.mxu0
        %v1158 = vadd.f32 0.0, %v1157
        %1159 = vmatmul.f32.gmra.mxu0 %v1048
        %v1160 = vpop.f32.mrf.mxu0
        %v1161 = vadd.f32 0.0, %v1160
        %1162 = vmatmul.f32.gmra.mxu0 %v1051
        %v1163 = vpop.f32.mrf.mxu0
        %v1164 = vadd.f32 0.0, %v1163
        %1165 = vmatmul.f32.gmra.mxu0 %v1054
        %v1166 = vpop.f32.mrf.mxu0
        %v1167 = vadd.f32 0.0, %v1166
        %1168 = vmatmul.f32.gmra.mxu0 %v1057
        %v1169 = vpop.f32.mrf.mxu0
        %v1170 = vadd.f32 0.0, %v1169
        %1171 = vmatmul.f32.gmra.mxu0 %v1060
        %v1172 = vpop.f32.mrf.mxu0
        %v1173 = vadd.f32 0.0, %v1172
        %1174 = vmatmul.f32.gmra.mxu0 %v1063
        %v1175 = vpop.f32.mrf.mxu0
        %v1176 = vadd.f32 0.0, %v1175
        %1177 = vmatmul.f32.gmra.mxu0 %v1066
        %v1178 = vpop.f32.mrf.mxu0
        %v1179 = vadd.f32 0.0, %v1178
        %1180 = vmatmul.f32.gmra.mxu0 %v1069
        %v1181 = vpop.f32.mrf.mxu0
        %v1182 = vadd.f32 0.0, %v1181
        %1183 = vmatmul.f32.gmra.mxu0 %v1072
        %v1184 = vpop.f32.mrf.mxu0
        %v1185 = vadd.f32 0.0, %v1184
        %1186 = vmatmul.f32.gmra.mxu0 %v1075
        %v1187 = vpop.f32.mrf.mxu0
        %v1188 = vadd.f32 0.0, %v1187
        %1189 = vmatmul.f32.gmra.mxu0 %v1078
        %v1190 = vpop.f32.mrf.mxu0
        %v1191 = vadd.f32 0.0, %v1190
        %1192 = vmatmul.f32.gmra.mxu0 %v1081
        %v1193 = vpop.f32.mrf.mxu0
        %v1194 = vadd.f32 0.0, %v1193
        %1195 = vmatmul.f32.gmra.mxu0 %v1084
        %v1196 = vpop.f32.mrf.mxu0
        %v1197 = vadd.f32 0.0, %v1196
        %1198 = vmatmul.f32.gmra.mxu0 %v1087
        %v1199 = vpop.f32.mrf.mxu0
        %v1200 = vadd.f32 0.0, %v1199
        %1201 = vmatmul.f32.gmra.mxu0 %v1090
        %v1202 = vpop.f32.mrf.mxu0
        %v1203 = vadd.f32 0.0, %v1202
        %1204 = vmatmul.f32.gmra.mxu0 %v1093
        %v1205 = vpop.f32.mrf.mxu0
        %v1206 = vadd.f32 0.0, %v1205
        %1207 = vmatmul.f32.gmra.mxu0 %v1096
        %v1208 = vpop.f32.mrf.mxu0
        %v1209 = vadd.f32 0.0, %v1208
        %1210 = vmatmul.f32.gmra.mxu0 %v1099
        %v1211 = vpop.f32.mrf.mxu0
        %v1212 = vadd.f32 0.0, %v1211
        %1213 = vmatmul.f32.gmra.mxu0 %v1102
        %v1214 = vpop.f32.mrf.mxu0
        %v1215 = vadd.f32 0.0, %v1214
        %1216 = vmatmul.f32.gmra.mxu0 %v1105
        %v1217 = vpop.f32.mrf.mxu0
        %v1218 = vadd.f32 0.0, %v1217
        %1219 = vmatmul.f32.gmra.mxu0 %v1108
        %v1220 = vpop.f32.mrf.mxu0
        %v1221 = vadd.f32 0.0, %v1220
        %1222 = vmatmul.f32.gmra.mxu0 %v1111
        %v1223 = vpop.f32.mrf.mxu0
        %v1224 = vadd.f32 0.0, %v1223
        %1225 = vmatmul.f32.gmra.mxu0 %v1114
        %v1226 = vpop.f32.mrf.mxu0
        %v1227 = vadd.f32 0.0, %v1226
        %1228 = vmatmul.f32.gmra.mxu0 %v1117
        %v1229 = vpop.f32.mrf.mxu0
        %v1230 = vadd.f32 0.0, %v1229
        %1231 = vmatmul.f32.gmra.mxu0 %v1120
        %v1232 = vpop.f32.mrf.mxu0
        %v1233 = vadd.f32 0.0, %v1232
        %1234 = vmatmul.f32.gmra.mxu0 %v1123
        %v1235 = vpop.f32.mrf.mxu0
        %v1236 = vadd.f32 0.0, %v1235
        %1237 = vdwg.mxu0
        %v1238 = vadd.f32 %v955, %v1143
        %v1239 = vadd.f32 %v956, %v1146
        %v1240 = vadd.f32 %v957, %v1149
        %v1241 = vadd.f32 %v958, %v1152
        %v1242 = vadd.f32 %v959, %v1155
        %v1243 = vadd.f32 %v960, %v1158
        %v1244 = vadd.f32 %v961, %v1161
        %v1245 = vadd.f32 %v962, %v1164
        %v1246 = vadd.f32 %v963, %v1167
        %v1247 = vadd.f32 %v964, %v1170
        %v1248 = vadd.f32 %v965, %v1173
        %v1249 = vadd.f32 %v966, %v1176
        %v1250 = vadd.f32 %v967, %v1179
        %v1251 = vadd.f32 %v968, %v1182
        %v1252 = vadd.f32 %v969, %v1185
        %v1253 = vadd.f32 %v970, %v1188
        %v1254 = vadd.f32 %v971, %v1191
        %v1255 = vadd.f32 %v972, %v1194
        %v1256 = vadd.f32 %v973, %v1197
        %v1257 = vadd.f32 %v974, %v1200
        %v1258 = vadd.f32 %v975, %v1203
        %v1259 = vadd.f32 %v976, %v1206
        %v1260 = vadd.f32 %v977, %v1209
        %v1261 = vadd.f32 %v978, %v1212
        %v1262 = vadd.f32 %v979, %v1215
        %v1263 = vadd.f32 %v980, %v1218
        %v1264 = vadd.f32 %v981, %v1221
        %v1265 = vadd.f32 %v982, %v1224
        %v1266 = vadd.f32 %v983, %v1227
        %v1267 = vadd.f32 %v984, %v1230
        %v1268 = vadd.f32 %v985, %v1233
        %v1269 = vadd.f32 %v986, %v1236
        %v1270 = vld [vmem:[%s987 + $0x1] sm:$0xff]
        %v1271 = vld [vmem:[%s987 + $0x9] sm:$0xff]
        %v1272 = vld [vmem:[%s987 + $0x19] sm:$0xff]
        %v1273 = vld [vmem:[%s987 + $0x21] sm:$0xff]
        %v1274 = vld [vmem:[%s987 + $0x31] sm:$0xff]
        %v1275 = vld [vmem:[%s987 + $0x39] sm:$0xff]
        %v1276 = vld [vmem:[%s987 + $0x49] sm:$0xff]
        %v1277 = vld [vmem:[%s987 + $0x51] sm:$0xff]
        %v1278 = vld [vmem:[%s987 + $0x61] sm:$0xff]
        %v1279 = vld [vmem:[%s987 + $0x69] sm:$0xff]
        %v1280 = vld [vmem:[%s987 + $0x79] sm:$0xff]
        %v1281 = vld [vmem:[%s987 + $0x81] sm:$0xff]
        %v1282 = vld [vmem:[%s987 + $0x91] sm:$0xff]
        %v1283 = vld [vmem:[%s987 + $0x99] sm:$0xff]
        %v1284 = vld [vmem:[%s987 + $0xa9] sm:$0xff]
        %v1285 = vld [vmem:[%s987 + $0xb1] sm:$0xff]
        %v1286 = vld [vmem:[%s987 + $0xc1] sm:$0xff]
        %v1287 = vld [vmem:[%s987 + $0xc9] sm:$0xff]
        %v1288 = vld [vmem:[%s987 + $0xd9] sm:$0xff]
        %v1289 = vld [vmem:[%s987 + $0xe1] sm:$0xff]
        %v1290 = vld [vmem:[%s987 + $0xf1] sm:$0xff]
        %v1291 = vld [vmem:[%s987 + $0xf9] sm:$0xff]
        %v1292 = vld [vmem:[%s987 + $0x109] sm:$0xff]
        %v1293 = vld [vmem:[%s987 + $0x111] sm:$0xff]
        %v1294 = vld [vmem:[%s987 + $0x121] sm:$0xff]
        %v1295 = vld [vmem:[%s987 + $0x129] sm:$0xff]
        %v1296 = vld [vmem:[%s987 + $0x139] sm:$0xff]
        %v1297 = vld [vmem:[%s987 + $0x141] sm:$0xff]
        %v1298 = vld [vmem:[%s987 + $0x151] sm:$0xff]
        %v1299 = vld [vmem:[%s987 + $0x159] sm:$0xff]
        %v1300 = vld [vmem:[%s987 + $0x169] sm:$0xff]
        %v1301 = vld [vmem:[%s987 + $0x171] sm:$0xff]
        %s1302 = scalar_lea.vmem %s1, 256
        %v1303 = vld [vmem:[%s1302] sm:$0xff]
        %v1304 = vld [vmem:[%s1302 + $0x8] sm:$0xff]
        %v1305 = vld [vmem:[%s1302 + $0x10] sm:$0xff]
        %v1306 = vld [vmem:[%s1302 + $0x18] sm:$0xff]
        %v1307 = vld [vmem:[%s1302 + $0x20] sm:$0xff]
        %v1308 = vld [vmem:[%s1302 + $0x28] sm:$0xff]
        %v1309 = vld [vmem:[%s1302 + $0x30] sm:$0xff]
        %v1310 = vld [vmem:[%s1302 + $0x38] sm:$0xff]
        %v1312 = vsel %vm286, %v1270, 0
        %v1315 = vsel %vm286, %v1271, 0
        %v1318 = vsel %vm286, %v1272, 0
        %v1321 = vsel %vm286, %v1273, 0
        %v1324 = vsel %vm286, %v1274, 0
        %v1327 = vsel %vm286, %v1275, 0
        %v1330 = vsel %vm286, %v1276, 0
        %v1333 = vsel %vm286, %v1277, 0
        %v1336 = vsel %vm286, %v1278, 0
        %v1339 = vsel %vm286, %v1279, 0
        %v1342 = vsel %vm286, %v1280, 0
        %v1345 = vsel %vm286, %v1281, 0
        %v1348 = vsel %vm286, %v1282, 0
        %v1351 = vsel %vm286, %v1283, 0
        %v1354 = vsel %vm286, %v1284, 0
        %v1357 = vsel %vm286, %v1285, 0
        %v1360 = vsel %vm286, %v1286, 0
        %v1363 = vsel %vm286, %v1287, 0
        %v1366 = vsel %vm286, %v1288, 0
        %v1369 = vsel %vm286, %v1289, 0
        %v1372 = vsel %vm286, %v1290, 0
        %v1375 = vsel %vm286, %v1291, 0
        %v1378 = vsel %vm286, %v1292, 0
        %v1381 = vsel %vm286, %v1293, 0
        %v1384 = vsel %vm286, %v1294, 0
        %v1387 = vsel %vm286, %v1295, 0
        %v1390 = vsel %vm286, %v1296, 0
        %v1393 = vsel %vm286, %v1297, 0
        %v1396 = vsel %vm286, %v1298, 0
        %v1399 = vsel %vm286, %v1299, 0
        %v1402 = vsel %vm286, %v1300, 0
        %v1405 = vsel %vm286, %v1301, 0
        %1407 = vmatpush.msra.mxu0 0.0
        %1408 = vmatpush.msra.mxu0 0.0
        %1409 = vmatpush.msra.mxu0 0.0
        %1410 = vmatpush.msra.mxu0 0.0
        %1411 = vmatpush.msra.mxu0 0.0
        %1412 = vmatpush.msra.mxu0 0.0
        %1413 = vmatpush.msra.mxu0 0.0
        %1414 = vmatpush.msra.mxu0 0.0
        %1415 = vmatpush.msra.mxu0 %v1310
        %1416 = vmatpush.msra.mxu0 %v1309
        %1417 = vmatpush.msra.mxu0 %v1308
        %1418 = vmatpush.msra.mxu0 %v1307
        %1419 = vmatpush.msra.mxu0 %v1306
        %1420 = vmatpush.msra.mxu0 %v1305
        %1421 = vmatpush.msra.mxu0 %v1304
        %1422 = vmatpush.msra.mxu0 %v1303
        %1423 = vmatmul.f32.gmra.mxu0 %v1312
        %v1424 = vpop.f32.mrf.mxu0
        %v1425 = vadd.f32 0.0, %v1424
        %1426 = vmatmul.f32.gmra.mxu0 %v1315
        %v1427 = vpop.f32.mrf.mxu0
        %v1428 = vadd.f32 0.0, %v1427
        %1429 = vmatmul.f32.gmra.mxu0 %v1318
        %v1430 = vpop.f32.mrf.mxu0
        %v1431 = vadd.f32 0.0, %v1430
        %1432 = vmatmul.f32.gmra.mxu0 %v1321
        %v1433 = vpop.f32.mrf.mxu0
        %v1434 = vadd.f32 0.0, %v1433
        %1435 = vmatmul.f32.gmra.mxu0 %v1324
        %v1436 = vpop.f32.mrf.mxu0
        %v1437 = vadd.f32 0.0, %v1436
        %1438 = vmatmul.f32.gmra.mxu0 %v1327
        %v1439 = vpop.f32.mrf.mxu0
        %v1440 = vadd.f32 0.0, %v1439
        %1441 = vmatmul.f32.gmra.mxu0 %v1330
        %v1442 = vpop.f32.mrf.mxu0
        %v1443 = vadd.f32 0.0, %v1442
        %1444 = vmatmul.f32.gmra.mxu0 %v1333
        %v1445 = vpop.f32.mrf.mxu0
        %v1446 = vadd.f32 0.0, %v1445
        %1447 = vmatmul.f32.gmra.mxu0 %v1336
        %v1448 = vpop.f32.mrf.mxu0
        %v1449 = vadd.f32 0.0, %v1448
        %1450 = vmatmul.f32.gmra.mxu0 %v1339
        %v1451 = vpop.f32.mrf.mxu0
        %v1452 = vadd.f32 0.0, %v1451
        %1453 = vmatmul.f32.gmra.mxu0 %v1342
        %v1454 = vpop.f32.mrf.mxu0
        %v1455 = vadd.f32 0.0, %v1454
        %1456 = vmatmul.f32.gmra.mxu0 %v1345
        %v1457 = vpop.f32.mrf.mxu0
        %v1458 = vadd.f32 0.0, %v1457
        %1459 = vmatmul.f32.gmra.mxu0 %v1348
        %v1460 = vpop.f32.mrf.mxu0
        %v1461 = vadd.f32 0.0, %v1460
        %1462 = vmatmul.f32.gmra.mxu0 %v1351
        %v1463 = vpop.f32.mrf.mxu0
        %v1464 = vadd.f32 0.0, %v1463
        %1465 = vmatmul.f32.gmra.mxu0 %v1354
        %v1466 = vpop.f32.mrf.mxu0
        %v1467 = vadd.f32 0.0, %v1466
        %1468 = vmatmul.f32.gmra.mxu0 %v1357
        %v1469 = vpop.f32.mrf.mxu0
        %v1470 = vadd.f32 0.0, %v1469
        %1471 = vmatmul.f32.gmra.mxu0 %v1360
        %v1472 = vpop.f32.mrf.mxu0
        %v1473 = vadd.f32 0.0, %v1472
        %1474 = vmatmul.f32.gmra.mxu0 %v1363
        %v1475 = vpop.f32.mrf.mxu0
        %v1476 = vadd.f32 0.0, %v1475
        %1477 = vmatmul.f32.gmra.mxu0 %v1366
        %v1478 = vpop.f32.mrf.mxu0
        %v1479 = vadd.f32 0.0, %v1478
        %1480 = vmatmul.f32.gmra.mxu0 %v1369
        %v1481 = vpop.f32.mrf.mxu0
        %v1482 = vadd.f32 0.0, %v1481
        %1483 = vmatmul.f32.gmra.mxu0 %v1372
        %v1484 = vpop.f32.mrf.mxu0
        %v1485 = vadd.f32 0.0, %v1484
        %1486 = vmatmul.f32.gmra.mxu0 %v1375
        %v1487 = vpop.f32.mrf.mxu0
        %v1488 = vadd.f32 0.0, %v1487
        %1489 = vmatmul.f32.gmra.mxu0 %v1378
        %v1490 = vpop.f32.mrf.mxu0
        %v1491 = vadd.f32 0.0, %v1490
        %1492 = vmatmul.f32.gmra.mxu0 %v1381
        %v1493 = vpop.f32.mrf.mxu0
        %v1494 = vadd.f32 0.0, %v1493
        %1495 = vmatmul.f32.gmra.mxu0 %v1384
        %v1496 = vpop.f32.mrf.mxu0
        %v1497 = vadd.f32 0.0, %v1496
        %1498 = vmatmul.f32.gmra.mxu0 %v1387
        %v1499 = vpop.f32.mrf.mxu0
        %v1500 = vadd.f32 0.0, %v1499
        %1501 = vmatmul.f32.gmra.mxu0 %v1390
        %v1502 = vpop.f32.mrf.mxu0
        %v1503 = vadd.f32 0.0, %v1502
        %1504 = vmatmul.f32.gmra.mxu0 %v1393
        %v1505 = vpop.f32.mrf.mxu0
        %v1506 = vadd.f32 0.0, %v1505
        %1507 = vmatmul.f32.gmra.mxu0 %v1396
        %v1508 = vpop.f32.mrf.mxu0
        %v1509 = vadd.f32 0.0, %v1508
        %1510 = vmatmul.f32.gmra.mxu0 %v1399
        %v1511 = vpop.f32.mrf.mxu0
        %v1512 = vadd.f32 0.0, %v1511
        %1513 = vmatmul.f32.gmra.mxu0 %v1402
        %v1514 = vpop.f32.mrf.mxu0
        %v1515 = vadd.f32 0.0, %v1514
        %1516 = vmatmul.f32.gmra.mxu0 %v1405
        %v1517 = vpop.f32.mrf.mxu0
        %v1518 = vadd.f32 0.0, %v1517
        %1519 = vdwg.mxu0
        %v1520 = vadd.f32 %v1238, %v1425
        %v1521 = vadd.f32 %v1239, %v1428
        %v1522 = vadd.f32 %v1240, %v1431
        %v1523 = vadd.f32 %v1241, %v1434
        %v1524 = vadd.f32 %v1242, %v1437
        %v1525 = vadd.f32 %v1243, %v1440
        %v1526 = vadd.f32 %v1244, %v1443
        %v1527 = vadd.f32 %v1245, %v1446
        %v1528 = vadd.f32 %v1246, %v1449
        %v1529 = vadd.f32 %v1247, %v1452
        %v1530 = vadd.f32 %v1248, %v1455
        %v1531 = vadd.f32 %v1249, %v1458
        %v1532 = vadd.f32 %v1250, %v1461
        %v1533 = vadd.f32 %v1251, %v1464
        %v1534 = vadd.f32 %v1252, %v1467
        %v1535 = vadd.f32 %v1253, %v1470
        %v1536 = vadd.f32 %v1254, %v1473
        %v1537 = vadd.f32 %v1255, %v1476
        %v1538 = vadd.f32 %v1256, %v1479
        %v1539 = vadd.f32 %v1257, %v1482
        %v1540 = vadd.f32 %v1258, %v1485
        %v1541 = vadd.f32 %v1259, %v1488
        %v1542 = vadd.f32 %v1260, %v1491
        %v1543 = vadd.f32 %v1261, %v1494
        %v1544 = vadd.f32 %v1262, %v1497
        %v1545 = vadd.f32 %v1263, %v1500
        %v1546 = vadd.f32 %v1264, %v1503
        %v1547 = vadd.f32 %v1265, %v1506
        %v1548 = vadd.f32 %v1266, %v1509
        %v1549 = vadd.f32 %v1267, %v1512
        %v1550 = vadd.f32 %v1268, %v1515
        %v1551 = vadd.f32 %v1269, %v1518
        %v1552 = vld [vmem:[%s987 + $0x2] sm:$0xff]
        %v1553 = vld [vmem:[%s987 + $0xa] sm:$0xff]
        %v1554 = vld [vmem:[%s987 + $0x1a] sm:$0xff]
        %v1555 = vld [vmem:[%s987 + $0x22] sm:$0xff]
        %v1556 = vld [vmem:[%s987 + $0x32] sm:$0xff]
        %v1557 = vld [vmem:[%s987 + $0x3a] sm:$0xff]
        %v1558 = vld [vmem:[%s987 + $0x4a] sm:$0xff]
        %v1559 = vld [vmem:[%s987 + $0x52] sm:$0xff]
        %v1560 = vld [vmem:[%s987 + $0x62] sm:$0xff]
        %v1561 = vld [vmem:[%s987 + $0x6a] sm:$0xff]
        %v1562 = vld [vmem:[%s987 + $0x7a] sm:$0xff]
        %v1563 = vld [vmem:[%s987 + $0x82] sm:$0xff]
        %v1564 = vld [vmem:[%s987 + $0x92] sm:$0xff]
        %v1565 = vld [vmem:[%s987 + $0x9a] sm:$0xff]
        %v1566 = vld [vmem:[%s987 + $0xaa] sm:$0xff]
        %v1567 = vld [vmem:[%s987 + $0xb2] sm:$0xff]
        %v1568 = vld [vmem:[%s987 + $0xc2] sm:$0xff]
        %v1569 = vld [vmem:[%s987 + $0xca] sm:$0xff]
        %v1570 = vld [vmem:[%s987 + $0xda] sm:$0xff]
        %v1571 = vld [vmem:[%s987 + $0xe2] sm:$0xff]
        %v1572 = vld [vmem:[%s987 + $0xf2] sm:$0xff]
        %v1573 = vld [vmem:[%s987 + $0xfa] sm:$0xff]
        %v1574 = vld [vmem:[%s987 + $0x10a] sm:$0xff]
        %v1575 = vld [vmem:[%s987 + $0x112] sm:$0xff]
        %v1576 = vld [vmem:[%s987 + $0x122] sm:$0xff]
        %v1577 = vld [vmem:[%s987 + $0x12a] sm:$0xff]
        %v1578 = vld [vmem:[%s987 + $0x13a] sm:$0xff]
        %v1579 = vld [vmem:[%s987 + $0x142] sm:$0xff]
        %v1580 = vld [vmem:[%s987 + $0x152] sm:$0xff]
        %v1581 = vld [vmem:[%s987 + $0x15a] sm:$0xff]
        %v1582 = vld [vmem:[%s987 + $0x16a] sm:$0xff]
        %v1583 = vld [vmem:[%s987 + $0x172] sm:$0xff]
        %s1584 = scalar_lea.vmem %s1, 320
        %v1585 = vld [vmem:[%s1584] sm:$0xff]
        %v1586 = vld [vmem:[%s1584 + $0x8] sm:$0xff]
        %v1587 = vld [vmem:[%s1584 + $0x10] sm:$0xff]
        %v1588 = vld [vmem:[%s1584 + $0x18] sm:$0xff]
        %v1589 = vld [vmem:[%s1584 + $0x20] sm:$0xff]
        %v1590 = vld [vmem:[%s1584 + $0x28] sm:$0xff]
        %v1591 = vld [vmem:[%s1584 + $0x30] sm:$0xff]
        %v1592 = vld [vmem:[%s1584 + $0x38] sm:$0xff]
        %v1594 = vsel %vm286, %v1552, 0
        %v1597 = vsel %vm286, %v1553, 0
        %v1600 = vsel %vm286, %v1554, 0
        %v1603 = vsel %vm286, %v1555, 0
        %v1606 = vsel %vm286, %v1556, 0
        %v1609 = vsel %vm286, %v1557, 0
        %v1612 = vsel %vm286, %v1558, 0
        %v1615 = vsel %vm286, %v1559, 0
        %v1618 = vsel %vm286, %v1560, 0
        %v1621 = vsel %vm286, %v1561, 0
        %v1624 = vsel %vm286, %v1562, 0
        %v1627 = vsel %vm286, %v1563, 0
        %v1630 = vsel %vm286, %v1564, 0
        %v1633 = vsel %vm286, %v1565, 0
        %v1636 = vsel %vm286, %v1566, 0
        %v1639 = vsel %vm286, %v1567, 0
        %v1642 = vsel %vm286, %v1568, 0
        %v1645 = vsel %vm286, %v1569, 0
        %v1648 = vsel %vm286, %v1570, 0
        %v1651 = vsel %vm286, %v1571, 0
        %v1654 = vsel %vm286, %v1572, 0
        %v1657 = vsel %vm286, %v1573, 0
        %v1660 = vsel %vm286, %v1574, 0
        %v1663 = vsel %vm286, %v1575, 0
        %v1666 = vsel %vm286, %v1576, 0
        %v1669 = vsel %vm286, %v1577, 0
        %v1672 = vsel %vm286, %v1578, 0
        %v1675 = vsel %vm286, %v1579, 0
        %v1678 = vsel %vm286, %v1580, 0
        %v1681 = vsel %vm286, %v1581, 0
        %v1684 = vsel %vm286, %v1582, 0
        %v1687 = vsel %vm286, %v1583, 0
        %1689 = vmatpush.msra.mxu0 0.0
        %1690 = vmatpush.msra.mxu0 0.0
        %1691 = vmatpush.msra.mxu0 0.0
        %1692 = vmatpush.msra.mxu0 0.0
        %1693 = vmatpush.msra.mxu0 0.0
        %1694 = vmatpush.msra.mxu0 0.0
        %1695 = vmatpush.msra.mxu0 0.0
        %1696 = vmatpush.msra.mxu0 0.0
        %1697 = vmatpush.msra.mxu0 %v1592
        %1698 = vmatpush.msra.mxu0 %v1591
        %1699 = vmatpush.msra.mxu0 %v1590
        %1700 = vmatpush.msra.mxu0 %v1589
        %1701 = vmatpush.msra.mxu0 %v1588
        %1702 = vmatpush.msra.mxu0 %v1587
        %1703 = vmatpush.msra.mxu0 %v1586
        %1704 = vmatpush.msra.mxu0 %v1585
        %1705 = vmatmul.f32.gmra.mxu0 %v1594
        %v1706 = vpop.f32.mrf.mxu0
        %v1707 = vadd.f32 0.0, %v1706
        %1708 = vmatmul.f32.gmra.mxu0 %v1597
        %v1709 = vpop.f32.mrf.mxu0
        %v1710 = vadd.f32 0.0, %v1709
        %1711 = vmatmul.f32.gmra.mxu0 %v1600
        %v1712 = vpop.f32.mrf.mxu0
        %v1713 = vadd.f32 0.0, %v1712
        %1714 = vmatmul.f32.gmra.mxu0 %v1603
        %v1715 = vpop.f32.mrf.mxu0
        %v1716 = vadd.f32 0.0, %v1715
        %1717 = vmatmul.f32.gmra.mxu0 %v1606
        %v1718 = vpop.f32.mrf.mxu0
        %v1719 = vadd.f32 0.0, %v1718
        %1720 = vmatmul.f32.gmra.mxu0 %v1609
        %v1721 = vpop.f32.mrf.mxu0
        %v1722 = vadd.f32 0.0, %v1721
        %1723 = vmatmul.f32.gmra.mxu0 %v1612
        %v1724 = vpop.f32.mrf.mxu0
        %v1725 = vadd.f32 0.0, %v1724
        %1726 = vmatmul.f32.gmra.mxu0 %v1615
        %v1727 = vpop.f32.mrf.mxu0
        %v1728 = vadd.f32 0.0, %v1727
        %1729 = vmatmul.f32.gmra.mxu0 %v1618
        %v1730 = vpop.f32.mrf.mxu0
        %v1731 = vadd.f32 0.0, %v1730
        %1732 = vmatmul.f32.gmra.mxu0 %v1621
        %v1733 = vpop.f32.mrf.mxu0
        %v1734 = vadd.f32 0.0, %v1733
        %1735 = vmatmul.f32.gmra.mxu0 %v1624
        %v1736 = vpop.f32.mrf.mxu0
        %v1737 = vadd.f32 0.0, %v1736
        %1738 = vmatmul.f32.gmra.mxu0 %v1627
        %v1739 = vpop.f32.mrf.mxu0
        %v1740 = vadd.f32 0.0, %v1739
        %1741 = vmatmul.f32.gmra.mxu0 %v1630
        %v1742 = vpop.f32.mrf.mxu0
        %v1743 = vadd.f32 0.0, %v1742
        %1744 = vmatmul.f32.gmra.mxu0 %v1633
        %v1745 = vpop.f32.mrf.mxu0
        %v1746 = vadd.f32 0.0, %v1745
        %1747 = vmatmul.f32.gmra.mxu0 %v1636
        %v1748 = vpop.f32.mrf.mxu0
        %v1749 = vadd.f32 0.0, %v1748
        %1750 = vmatmul.f32.gmra.mxu0 %v1639
        %v1751 = vpop.f32.mrf.mxu0
        %v1752 = vadd.f32 0.0, %v1751
        %1753 = vmatmul.f32.gmra.mxu0 %v1642
        %v1754 = vpop.f32.mrf.mxu0
        %v1755 = vadd.f32 0.0, %v1754
        %1756 = vmatmul.f32.gmra.mxu0 %v1645
        %v1757 = vpop.f32.mrf.mxu0
        %v1758 = vadd.f32 0.0, %v1757
        %1759 = vmatmul.f32.gmra.mxu0 %v1648
        %v1760 = vpop.f32.mrf.mxu0
        %v1761 = vadd.f32 0.0, %v1760
        %1762 = vmatmul.f32.gmra.mxu0 %v1651
        %v1763 = vpop.f32.mrf.mxu0
        %v1764 = vadd.f32 0.0, %v1763
        %1765 = vmatmul.f32.gmra.mxu0 %v1654
        %v1766 = vpop.f32.mrf.mxu0
        %v1767 = vadd.f32 0.0, %v1766
        %1768 = vmatmul.f32.gmra.mxu0 %v1657
        %v1769 = vpop.f32.mrf.mxu0
        %v1770 = vadd.f32 0.0, %v1769
        %1771 = vmatmul.f32.gmra.mxu0 %v1660
        %v1772 = vpop.f32.mrf.mxu0
        %v1773 = vadd.f32 0.0, %v1772
        %1774 = vmatmul.f32.gmra.mxu0 %v1663
        %v1775 = vpop.f32.mrf.mxu0
        %v1776 = vadd.f32 0.0, %v1775
        %1777 = vmatmul.f32.gmra.mxu0 %v1666
        %v1778 = vpop.f32.mrf.mxu0
        %v1779 = vadd.f32 0.0, %v1778
        %1780 = vmatmul.f32.gmra.mxu0 %v1669
        %v1781 = vpop.f32.mrf.mxu0
        %v1782 = vadd.f32 0.0, %v1781
        %1783 = vmatmul.f32.gmra.mxu0 %v1672
        %v1784 = vpop.f32.mrf.mxu0
        %v1785 = vadd.f32 0.0, %v1784
        %1786 = vmatmul.f32.gmra.mxu0 %v1675
        %v1787 = vpop.f32.mrf.mxu0
        %v1788 = vadd.f32 0.0, %v1787
        %1789 = vmatmul.f32.gmra.mxu0 %v1678
        %v1790 = vpop.f32.mrf.mxu0
        %v1791 = vadd.f32 0.0, %v1790
        %1792 = vmatmul.f32.gmra.mxu0 %v1681
        %v1793 = vpop.f32.mrf.mxu0
        %v1794 = vadd.f32 0.0, %v1793
        %1795 = vmatmul.f32.gmra.mxu0 %v1684
        %v1796 = vpop.f32.mrf.mxu0
        %v1797 = vadd.f32 0.0, %v1796
        %1798 = vmatmul.f32.gmra.mxu0 %v1687
        %v1799 = vpop.f32.mrf.mxu0
        %v1800 = vadd.f32 0.0, %v1799
        %1801 = vdwg.mxu0
        %v1802 = vadd.f32 %v1520, %v1707
        %v1803 = vadd.f32 %v1521, %v1710
        %v1804 = vadd.f32 %v1522, %v1713
        %v1805 = vadd.f32 %v1523, %v1716
        %v1806 = vadd.f32 %v1524, %v1719
        %v1807 = vadd.f32 %v1525, %v1722
        %v1808 = vadd.f32 %v1526, %v1725
        %v1809 = vadd.f32 %v1527, %v1728
        %v1810 = vadd.f32 %v1528, %v1731
        %v1811 = vadd.f32 %v1529, %v1734
        %v1812 = vadd.f32 %v1530, %v1737
        %v1813 = vadd.f32 %v1531, %v1740
        %v1814 = vadd.f32 %v1532, %v1743
        %v1815 = vadd.f32 %v1533, %v1746
        %v1816 = vadd.f32 %v1534, %v1749
        %v1817 = vadd.f32 %v1535, %v1752
        %v1818 = vadd.f32 %v1536, %v1755
        %v1819 = vadd.f32 %v1537, %v1758
        %v1820 = vadd.f32 %v1538, %v1761
        %v1821 = vadd.f32 %v1539, %v1764
        %v1822 = vadd.f32 %v1540, %v1767
        %v1823 = vadd.f32 %v1541, %v1770
        %v1824 = vadd.f32 %v1542, %v1773
        %v1825 = vadd.f32 %v1543, %v1776
        %v1826 = vadd.f32 %v1544, %v1779
        %v1827 = vadd.f32 %v1545, %v1782
        %v1828 = vadd.f32 %v1546, %v1785
        %v1829 = vadd.f32 %v1547, %v1788
        %v1830 = vadd.f32 %v1548, %v1791
        %v1831 = vadd.f32 %v1549, %v1794
        %v1832 = vadd.f32 %v1550, %v1797
        %v1833 = vadd.f32 %v1551, %v1800
        %s1834 = scalar_lea.vmem %s204, 48
        %v1835 = vld [vmem:[%s1834] sm:$0xff]
        %v1836 = vld [vmem:[%s1834 + $0x8] sm:$0xff]
        %v1837 = vld [vmem:[%s1834 + $0x18] sm:$0xff]
        %v1838 = vld [vmem:[%s1834 + $0x20] sm:$0xff]
        %v1839 = vld [vmem:[%s1834 + $0x30] sm:$0xff]
        %v1840 = vld [vmem:[%s1834 + $0x38] sm:$0xff]
        %v1841 = vld [vmem:[%s1834 + $0x48] sm:$0xff]
        %v1842 = vld [vmem:[%s1834 + $0x50] sm:$0xff]
        %v1843 = vld [vmem:[%s1834 + $0x60] sm:$0xff]
        %v1844 = vld [vmem:[%s1834 + $0x68] sm:$0xff]
        %v1845 = vld [vmem:[%s1834 + $0x78] sm:$0xff]
        %v1846 = vld [vmem:[%s1834 + $0x80] sm:$0xff]
        %v1847 = vld [vmem:[%s1834 + $0x90] sm:$0xff]
        %v1848 = vld [vmem:[%s1834 + $0x98] sm:$0xff]
        %v1849 = vld [vmem:[%s1834 + $0xa8] sm:$0xff]
        %v1850 = vld [vmem:[%s1834 + $0xb0] sm:$0xff]
        %v1851 = vld [vmem:[%s1834 + $0xc0] sm:$0xff]
        %v1852 = vld [vmem:[%s1834 + $0xc8] sm:$0xff]
        %v1853 = vld [vmem:[%s1834 + $0xd8] sm:$0xff]
        %v1854 = vld [vmem:[%s1834 + $0xe0] sm:$0xff]
        %v1855 = vld [vmem:[%s1834 + $0xf0] sm:$0xff]
        %v1856 = vld [vmem:[%s1834 + $0xf8] sm:$0xff]
        %v1857 = vld [vmem:[%s1834 + $0x108] sm:$0xff]
        %v1858 = vld [vmem:[%s1834 + $0x110] sm:$0xff]
        %v1859 = vld [vmem:[%s1834 + $0x120] sm:$0xff]
        %v1860 = vld [vmem:[%s1834 + $0x128] sm:$0xff]
        %v1861 = vld [vmem:[%s1834 + $0x138] sm:$0xff]
        %v1862 = vld [vmem:[%s1834 + $0x140] sm:$0xff]
        %v1863 = vld [vmem:[%s1834 + $0x150] sm:$0xff]
        %v1864 = vld [vmem:[%s1834 + $0x158] sm:$0xff]
        %v1865 = vld [vmem:[%s1834 + $0x168] sm:$0xff]
        %v1866 = vld [vmem:[%s1834 + $0x170] sm:$0xff]
        %s1867 = scalar_lea.vmem %s1, 384
        %v1868 = vld [vmem:[%s1867] sm:$0xff]
        %v1869 = vld [vmem:[%s1867 + $0x8] sm:$0xff]
        %v1870 = vld [vmem:[%s1867 + $0x10] sm:$0xff]
        %v1871 = vld [vmem:[%s1867 + $0x18] sm:$0xff]
        %v1872 = vld [vmem:[%s1867 + $0x20] sm:$0xff]
        %v1873 = vld [vmem:[%s1867 + $0x28] sm:$0xff]
        %v1874 = vld [vmem:[%s1867 + $0x30] sm:$0xff]
        %v1875 = vld [vmem:[%s1867 + $0x38] sm:$0xff]
        %v1877 = vsel %vm286, %v1835, 0
        %v1880 = vsel %vm286, %v1836, 0
        %v1883 = vsel %vm286, %v1837, 0
        %v1886 = vsel %vm286, %v1838, 0
        %v1889 = vsel %vm286, %v1839, 0
        %v1892 = vsel %vm286, %v1840, 0
        %v1895 = vsel %vm286, %v1841, 0
        %v1898 = vsel %vm286, %v1842, 0
        %v1901 = vsel %vm286, %v1843, 0
        %v1904 = vsel %vm286, %v1844, 0
        %v1907 = vsel %vm286, %v1845, 0
        %v1910 = vsel %vm286, %v1846, 0
        %v1913 = vsel %vm286, %v1847, 0
        %v1916 = vsel %vm286, %v1848, 0
        %v1919 = vsel %vm286, %v1849, 0
        %v1922 = vsel %vm286, %v1850, 0
        %v1925 = vsel %vm286, %v1851, 0
        %v1928 = vsel %vm286, %v1852, 0
        %v1931 = vsel %vm286, %v1853, 0
        %v1934 = vsel %vm286, %v1854, 0
        %v1937 = vsel %vm286, %v1855, 0
        %v1940 = vsel %vm286, %v1856, 0
        %v1943 = vsel %vm286, %v1857, 0
        %v1946 = vsel %vm286, %v1858, 0
        %v1949 = vsel %vm286, %v1859, 0
        %v1952 = vsel %vm286, %v1860, 0
        %v1955 = vsel %vm286, %v1861, 0
        %v1958 = vsel %vm286, %v1862, 0
        %v1961 = vsel %vm286, %v1863, 0
        %v1964 = vsel %vm286, %v1864, 0
        %v1967 = vsel %vm286, %v1865, 0
        %v1970 = vsel %vm286, %v1866, 0
        %1972 = vmatpush.msra.mxu0 0.0
        %1973 = vmatpush.msra.mxu0 0.0
        %1974 = vmatpush.msra.mxu0 0.0
        %1975 = vmatpush.msra.mxu0 0.0
        %1976 = vmatpush.msra.mxu0 0.0
        %1977 = vmatpush.msra.mxu0 0.0
        %1978 = vmatpush.msra.mxu0 0.0
        %1979 = vmatpush.msra.mxu0 0.0
        %1980 = vmatpush.msra.mxu0 %v1875
        %1981 = vmatpush.msra.mxu0 %v1874
        %1982 = vmatpush.msra.mxu0 %v1873
        %1983 = vmatpush.msra.mxu0 %v1872
        %1984 = vmatpush.msra.mxu0 %v1871
        %1985 = vmatpush.msra.mxu0 %v1870
        %1986 = vmatpush.msra.mxu0 %v1869
        %1987 = vmatpush.msra.mxu0 %v1868
        %1988 = vmatmul.f32.gmra.mxu0 %v1877
        %v1989 = vpop.f32.mrf.mxu0
        %v1990 = vadd.f32 0.0, %v1989
        %1991 = vmatmul.f32.gmra.mxu0 %v1880
        %v1992 = vpop.f32.mrf.mxu0
        %v1993 = vadd.f32 0.0, %v1992
        %1994 = vmatmul.f32.gmra.mxu0 %v1883
        %v1995 = vpop.f32.mrf.mxu0
        %v1996 = vadd.f32 0.0, %v1995
        %1997 = vmatmul.f32.gmra.mxu0 %v1886
        %v1998 = vpop.f32.mrf.mxu0
        %v1999 = vadd.f32 0.0, %v1998
        %2000 = vmatmul.f32.gmra.mxu0 %v1889
        %v2001 = vpop.f32.mrf.mxu0
        %v2002 = vadd.f32 0.0, %v2001
        %2003 = vmatmul.f32.gmra.mxu0 %v1892
        %v2004 = vpop.f32.mrf.mxu0
        %v2005 = vadd.f32 0.0, %v2004
        %2006 = vmatmul.f32.gmra.mxu0 %v1895
        %v2007 = vpop.f32.mrf.mxu0
        %v2008 = vadd.f32 0.0, %v2007
        %2009 = vmatmul.f32.gmra.mxu0 %v1898
        %v2010 = vpop.f32.mrf.mxu0
        %v2011 = vadd.f32 0.0, %v2010
        %2012 = vmatmul.f32.gmra.mxu0 %v1901
        %v2013 = vpop.f32.mrf.mxu0
        %v2014 = vadd.f32 0.0, %v2013
        %2015 = vmatmul.f32.gmra.mxu0 %v1904
        %v2016 = vpop.f32.mrf.mxu0
        %v2017 = vadd.f32 0.0, %v2016
        %2018 = vmatmul.f32.gmra.mxu0 %v1907
        %v2019 = vpop.f32.mrf.mxu0
        %v2020 = vadd.f32 0.0, %v2019
        %2021 = vmatmul.f32.gmra.mxu0 %v1910
        %v2022 = vpop.f32.mrf.mxu0
        %v2023 = vadd.f32 0.0, %v2022
        %2024 = vmatmul.f32.gmra.mxu0 %v1913
        %v2025 = vpop.f32.mrf.mxu0
        %v2026 = vadd.f32 0.0, %v2025
        %2027 = vmatmul.f32.gmra.mxu0 %v1916
        %v2028 = vpop.f32.mrf.mxu0
        %v2029 = vadd.f32 0.0, %v2028
        %2030 = vmatmul.f32.gmra.mxu0 %v1919
        %v2031 = vpop.f32.mrf.mxu0
        %v2032 = vadd.f32 0.0, %v2031
        %2033 = vmatmul.f32.gmra.mxu0 %v1922
        %v2034 = vpop.f32.mrf.mxu0
        %v2035 = vadd.f32 0.0, %v2034
        %2036 = vmatmul.f32.gmra.mxu0 %v1925
        %v2037 = vpop.f32.mrf.mxu0
        %v2038 = vadd.f32 0.0, %v2037
        %2039 = vmatmul.f32.gmra.mxu0 %v1928
        %v2040 = vpop.f32.mrf.mxu0
        %v2041 = vadd.f32 0.0, %v2040
        %2042 = vmatmul.f32.gmra.mxu0 %v1931
        %v2043 = vpop.f32.mrf.mxu0
        %v2044 = vadd.f32 0.0, %v2043
        %2045 = vmatmul.f32.gmra.mxu0 %v1934
        %v2046 = vpop.f32.mrf.mxu0
        %v2047 = vadd.f32 0.0, %v2046
        %2048 = vmatmul.f32.gmra.mxu0 %v1937
        %v2049 = vpop.f32.mrf.mxu0
        %v2050 = vadd.f32 0.0, %v2049
        %2051 = vmatmul.f32.gmra.mxu0 %v1940
        %v2052 = vpop.f32.mrf.mxu0
        %v2053 = vadd.f32 0.0, %v2052
        %2054 = vmatmul.f32.gmra.mxu0 %v1943
        %v2055 = vpop.f32.mrf.mxu0
        %v2056 = vadd.f32 0.0, %v2055
        %2057 = vmatmul.f32.gmra.mxu0 %v1946
        %v2058 = vpop.f32.mrf.mxu0
        %v2059 = vadd.f32 0.0, %v2058
        %2060 = vmatmul.f32.gmra.mxu0 %v1949
        %v2061 = vpop.f32.mrf.mxu0
        %v2062 = vadd.f32 0.0, %v2061
        %2063 = vmatmul.f32.gmra.mxu0 %v1952
        %v2064 = vpop.f32.mrf.mxu0
        %v2065 = vadd.f32 0.0, %v2064
        %2066 = vmatmul.f32.gmra.mxu0 %v1955
        %v2067 = vpop.f32.mrf.mxu0
        %v2068 = vadd.f32 0.0, %v2067
        %2069 = vmatmul.f32.gmra.mxu0 %v1958
        %v2070 = vpop.f32.mrf.mxu0
        %v2071 = vadd.f32 0.0, %v2070
        %2072 = vmatmul.f32.gmra.mxu0 %v1961
        %v2073 = vpop.f32.mrf.mxu0
        %v2074 = vadd.f32 0.0, %v2073
        %2075 = vmatmul.f32.gmra.mxu0 %v1964
        %v2076 = vpop.f32.mrf.mxu0
        %v2077 = vadd.f32 0.0, %v2076
        %2078 = vmatmul.f32.gmra.mxu0 %v1967
        %v2079 = vpop.f32.mrf.mxu0
        %v2080 = vadd.f32 0.0, %v2079
        %2081 = vmatmul.f32.gmra.mxu0 %v1970
        %v2082 = vpop.f32.mrf.mxu0
        %v2083 = vadd.f32 0.0, %v2082
        %2084 = vdwg.mxu0
        %v2085 = vadd.f32 %v1802, %v1990
        %v2086 = vadd.f32 %v1803, %v1993
        %v2087 = vadd.f32 %v1804, %v1996
        %v2088 = vadd.f32 %v1805, %v1999
        %v2089 = vadd.f32 %v1806, %v2002
        %v2090 = vadd.f32 %v1807, %v2005
        %v2091 = vadd.f32 %v1808, %v2008
        %v2092 = vadd.f32 %v1809, %v2011
        %v2093 = vadd.f32 %v1810, %v2014
        %v2094 = vadd.f32 %v1811, %v2017
        %v2095 = vadd.f32 %v1812, %v2020
        %v2096 = vadd.f32 %v1813, %v2023
        %v2097 = vadd.f32 %v1814, %v2026
        %v2098 = vadd.f32 %v1815, %v2029
        %v2099 = vadd.f32 %v1816, %v2032
        %v2100 = vadd.f32 %v1817, %v2035
        %v2101 = vadd.f32 %v1818, %v2038
        %v2102 = vadd.f32 %v1819, %v2041
        %v2103 = vadd.f32 %v1820, %v2044
        %v2104 = vadd.f32 %v1821, %v2047
        %v2105 = vadd.f32 %v1822, %v2050
        %v2106 = vadd.f32 %v1823, %v2053
        %v2107 = vadd.f32 %v1824, %v2056
        %v2108 = vadd.f32 %v1825, %v2059
        %v2109 = vadd.f32 %v1826, %v2062
        %v2110 = vadd.f32 %v1827, %v2065
        %v2111 = vadd.f32 %v1828, %v2068
        %v2112 = vadd.f32 %v1829, %v2071
        %v2113 = vadd.f32 %v1830, %v2074
        %v2114 = vadd.f32 %v1831, %v2077
        %v2115 = vadd.f32 %v1832, %v2080
        %v2116 = vadd.f32 %v1833, %v2083
        %v2117 = vld [vmem:[%s1834 + $0x1] sm:$0xff]
        %v2118 = vld [vmem:[%s1834 + $0x9] sm:$0xff]
        %v2119 = vld [vmem:[%s1834 + $0x19] sm:$0xff]
        %v2120 = vld [vmem:[%s1834 + $0x21] sm:$0xff]
        %v2121 = vld [vmem:[%s1834 + $0x31] sm:$0xff]
        %v2122 = vld [vmem:[%s1834 + $0x39] sm:$0xff]
        %v2123 = vld [vmem:[%s1834 + $0x49] sm:$0xff]
        %v2124 = vld [vmem:[%s1834 + $0x51] sm:$0xff]
        %v2125 = vld [vmem:[%s1834 + $0x61] sm:$0xff]
        %v2126 = vld [vmem:[%s1834 + $0x69] sm:$0xff]
        %v2127 = vld [vmem:[%s1834 + $0x79] sm:$0xff]
        %v2128 = vld [vmem:[%s1834 + $0x81] sm:$0xff]
        %v2129 = vld [vmem:[%s1834 + $0x91] sm:$0xff]
        %v2130 = vld [vmem:[%s1834 + $0x99] sm:$0xff]
        %v2131 = vld [vmem:[%s1834 + $0xa9] sm:$0xff]
        %v2132 = vld [vmem:[%s1834 + $0xb1] sm:$0xff]
        %v2133 = vld [vmem:[%s1834 + $0xc1] sm:$0xff]
        %v2134 = vld [vmem:[%s1834 + $0xc9] sm:$0xff]
        %v2135 = vld [vmem:[%s1834 + $0xd9] sm:$0xff]
        %v2136 = vld [vmem:[%s1834 + $0xe1] sm:$0xff]
        %v2137 = vld [vmem:[%s1834 + $0xf1] sm:$0xff]
        %v2138 = vld [vmem:[%s1834 + $0xf9] sm:$0xff]
        %v2139 = vld [vmem:[%s1834 + $0x109] sm:$0xff]
        %v2140 = vld [vmem:[%s1834 + $0x111] sm:$0xff]
        %v2141 = vld [vmem:[%s1834 + $0x121] sm:$0xff]
        %v2142 = vld [vmem:[%s1834 + $0x129] sm:$0xff]
        %v2143 = vld [vmem:[%s1834 + $0x139] sm:$0xff]
        %v2144 = vld [vmem:[%s1834 + $0x141] sm:$0xff]
        %v2145 = vld [vmem:[%s1834 + $0x151] sm:$0xff]
        %v2146 = vld [vmem:[%s1834 + $0x159] sm:$0xff]
        %v2147 = vld [vmem:[%s1834 + $0x169] sm:$0xff]
        %v2148 = vld [vmem:[%s1834 + $0x171] sm:$0xff]
        %s2149 = scalar_lea.vmem %s1, 448
        %v2150 = vld [vmem:[%s2149] sm:$0xff]
        %v2151 = vld [vmem:[%s2149 + $0x8] sm:$0xff]
        %v2152 = vld [vmem:[%s2149 + $0x10] sm:$0xff]
        %v2153 = vld [vmem:[%s2149 + $0x18] sm:$0xff]
        %v2154 = vld [vmem:[%s2149 + $0x20] sm:$0xff]
        %v2155 = vld [vmem:[%s2149 + $0x28] sm:$0xff]
        %v2156 = vld [vmem:[%s2149 + $0x30] sm:$0xff]
        %v2157 = vld [vmem:[%s2149 + $0x38] sm:$0xff]
        %v2159 = vsel %vm286, %v2117, 0
        %v2162 = vsel %vm286, %v2118, 0
        %v2165 = vsel %vm286, %v2119, 0
        %v2168 = vsel %vm286, %v2120, 0
        %v2171 = vsel %vm286, %v2121, 0
        %v2174 = vsel %vm286, %v2122, 0
        %v2177 = vsel %vm286, %v2123, 0
        %v2180 = vsel %vm286, %v2124, 0
        %v2183 = vsel %vm286, %v2125, 0
        %v2186 = vsel %vm286, %v2126, 0
        %v2189 = vsel %vm286, %v2127, 0
        %v2192 = vsel %vm286, %v2128, 0
        %v2195 = vsel %vm286, %v2129, 0
        %v2198 = vsel %vm286, %v2130, 0
        %v2201 = vsel %vm286, %v2131, 0
        %v2204 = vsel %vm286, %v2132, 0
        %v2207 = vsel %vm286, %v2133, 0
        %v2210 = vsel %vm286, %v2134, 0
        %v2213 = vsel %vm286, %v2135, 0
        %v2216 = vsel %vm286, %v2136, 0
        %v2219 = vsel %vm286, %v2137, 0
        %v2222 = vsel %vm286, %v2138, 0
        %v2225 = vsel %vm286, %v2139, 0
        %v2228 = vsel %vm286, %v2140, 0
        %v2231 = vsel %vm286, %v2141, 0
        %v2234 = vsel %vm286, %v2142, 0
        %v2237 = vsel %vm286, %v2143, 0
        %v2240 = vsel %vm286, %v2144, 0
        %v2243 = vsel %vm286, %v2145, 0
        %v2246 = vsel %vm286, %v2146, 0
        %v2249 = vsel %vm286, %v2147, 0
        %v2252 = vsel %vm286, %v2148, 0
        %2254 = vmatpush.msra.mxu0 0.0
        %2255 = vmatpush.msra.mxu0 0.0
        %2256 = vmatpush.msra.mxu0 0.0
        %2257 = vmatpush.msra.mxu0 0.0
        %2258 = vmatpush.msra.mxu0 0.0
        %2259 = vmatpush.msra.mxu0 0.0
        %2260 = vmatpush.msra.mxu0 0.0
        %2261 = vmatpush.msra.mxu0 0.0
        %2262 = vmatpush.msra.mxu0 %v2157
        %2263 = vmatpush.msra.mxu0 %v2156
        %2264 = vmatpush.msra.mxu0 %v2155
        %2265 = vmatpush.msra.mxu0 %v2154
        %2266 = vmatpush.msra.mxu0 %v2153
        %2267 = vmatpush.msra.mxu0 %v2152
        %2268 = vmatpush.msra.mxu0 %v2151
        %2269 = vmatpush.msra.mxu0 %v2150
        %2270 = vmatmul.f32.gmra.mxu0 %v2159
        %v2271 = vpop.f32.mrf.mxu0
        %v2272 = vadd.f32 0.0, %v2271
        %2273 = vmatmul.f32.gmra.mxu0 %v2162
        %v2274 = vpop.f32.mrf.mxu0
        %v2275 = vadd.f32 0.0, %v2274
        %2276 = vmatmul.f32.gmra.mxu0 %v2165
        %v2277 = vpop.f32.mrf.mxu0
        %v2278 = vadd.f32 0.0, %v2277
        %2279 = vmatmul.f32.gmra.mxu0 %v2168
        %v2280 = vpop.f32.mrf.mxu0
        %v2281 = vadd.f32 0.0, %v2280
        %2282 = vmatmul.f32.gmra.mxu0 %v2171
        %v2283 = vpop.f32.mrf.mxu0
        %v2284 = vadd.f32 0.0, %v2283
        %2285 = vmatmul.f32.gmra.mxu0 %v2174
        %v2286 = vpop.f32.mrf.mxu0
        %v2287 = vadd.f32 0.0, %v2286
        %2288 = vmatmul.f32.gmra.mxu0 %v2177
        %v2289 = vpop.f32.mrf.mxu0
        %v2290 = vadd.f32 0.0, %v2289
        %2291 = vmatmul.f32.gmra.mxu0 %v2180
        %v2292 = vpop.f32.mrf.mxu0
        %v2293 = vadd.f32 0.0, %v2292
        %2294 = vmatmul.f32.gmra.mxu0 %v2183
        %v2295 = vpop.f32.mrf.mxu0
        %v2296 = vadd.f32 0.0, %v2295
        %2297 = vmatmul.f32.gmra.mxu0 %v2186
        %v2298 = vpop.f32.mrf.mxu0
        %v2299 = vadd.f32 0.0, %v2298
        %2300 = vmatmul.f32.gmra.mxu0 %v2189
        %v2301 = vpop.f32.mrf.mxu0
        %v2302 = vadd.f32 0.0, %v2301
        %2303 = vmatmul.f32.gmra.mxu0 %v2192
        %v2304 = vpop.f32.mrf.mxu0
        %v2305 = vadd.f32 0.0, %v2304
        %2306 = vmatmul.f32.gmra.mxu0 %v2195
        %v2307 = vpop.f32.mrf.mxu0
        %v2308 = vadd.f32 0.0, %v2307
        %2309 = vmatmul.f32.gmra.mxu0 %v2198
        %v2310 = vpop.f32.mrf.mxu0
        %v2311 = vadd.f32 0.0, %v2310
        %2312 = vmatmul.f32.gmra.mxu0 %v2201
        %v2313 = vpop.f32.mrf.mxu0
        %v2314 = vadd.f32 0.0, %v2313
        %2315 = vmatmul.f32.gmra.mxu0 %v2204
        %v2316 = vpop.f32.mrf.mxu0
        %v2317 = vadd.f32 0.0, %v2316
        %2318 = vmatmul.f32.gmra.mxu0 %v2207
        %v2319 = vpop.f32.mrf.mxu0
        %v2320 = vadd.f32 0.0, %v2319
        %2321 = vmatmul.f32.gmra.mxu0 %v2210
        %v2322 = vpop.f32.mrf.mxu0
        %v2323 = vadd.f32 0.0, %v2322
        %2324 = vmatmul.f32.gmra.mxu0 %v2213
        %v2325 = vpop.f32.mrf.mxu0
        %v2326 = vadd.f32 0.0, %v2325
        %2327 = vmatmul.f32.gmra.mxu0 %v2216
        %v2328 = vpop.f32.mrf.mxu0
        %v2329 = vadd.f32 0.0, %v2328
        %2330 = vmatmul.f32.gmra.mxu0 %v2219
        %v2331 = vpop.f32.mrf.mxu0
        %v2332 = vadd.f32 0.0, %v2331
        %2333 = vmatmul.f32.gmra.mxu0 %v2222
        %v2334 = vpop.f32.mrf.mxu0
        %v2335 = vadd.f32 0.0, %v2334
        %2336 = vmatmul.f32.gmra.mxu0 %v2225
        %v2337 = vpop.f32.mrf.mxu0
        %v2338 = vadd.f32 0.0, %v2337
        %2339 = vmatmul.f32.gmra.mxu0 %v2228
        %v2340 = vpop.f32.mrf.mxu0
        %v2341 = vadd.f32 0.0, %v2340
        %2342 = vmatmul.f32.gmra.mxu0 %v2231
        %v2343 = vpop.f32.mrf.mxu0
        %v2344 = vadd.f32 0.0, %v2343
        %2345 = vmatmul.f32.gmra.mxu0 %v2234
        %v2346 = vpop.f32.mrf.mxu0
        %v2347 = vadd.f32 0.0, %v2346
        %2348 = vmatmul.f32.gmra.mxu0 %v2237
        %v2349 = vpop.f32.mrf.mxu0
        %v2350 = vadd.f32 0.0, %v2349
        %2351 = vmatmul.f32.gmra.mxu0 %v2240
        %v2352 = vpop.f32.mrf.mxu0
        %v2353 = vadd.f32 0.0, %v2352
        %2354 = vmatmul.f32.gmra.mxu0 %v2243
        %v2355 = vpop.f32.mrf.mxu0
        %v2356 = vadd.f32 0.0, %v2355
        %2357 = vmatmul.f32.gmra.mxu0 %v2246
        %v2358 = vpop.f32.mrf.mxu0
        %v2359 = vadd.f32 0.0, %v2358
        %2360 = vmatmul.f32.gmra.mxu0 %v2249
        %v2361 = vpop.f32.mrf.mxu0
        %v2362 = vadd.f32 0.0, %v2361
        %2363 = vmatmul.f32.gmra.mxu0 %v2252
        %v2364 = vpop.f32.mrf.mxu0
        %v2365 = vadd.f32 0.0, %v2364
        %2366 = vdwg.mxu0
        %v2367 = vadd.f32 %v2085, %v2272
        %v2368 = vadd.f32 %v2086, %v2275
        %v2369 = vadd.f32 %v2087, %v2278
        %v2370 = vadd.f32 %v2088, %v2281
        %v2371 = vadd.f32 %v2089, %v2284
        %v2372 = vadd.f32 %v2090, %v2287
        %v2373 = vadd.f32 %v2091, %v2290
        %v2374 = vadd.f32 %v2092, %v2293
        %v2375 = vadd.f32 %v2093, %v2296
        %v2376 = vadd.f32 %v2094, %v2299
        %v2377 = vadd.f32 %v2095, %v2302
        %v2378 = vadd.f32 %v2096, %v2305
        %v2379 = vadd.f32 %v2097, %v2308
        %v2380 = vadd.f32 %v2098, %v2311
        %v2381 = vadd.f32 %v2099, %v2314
        %v2382 = vadd.f32 %v2100, %v2317
        %v2383 = vadd.f32 %v2101, %v2320
        %v2384 = vadd.f32 %v2102, %v2323
        %v2385 = vadd.f32 %v2103, %v2326
        %v2386 = vadd.f32 %v2104, %v2329
        %v2387 = vadd.f32 %v2105, %v2332
        %v2388 = vadd.f32 %v2106, %v2335
        %v2389 = vadd.f32 %v2107, %v2338
        %v2390 = vadd.f32 %v2108, %v2341
        %v2391 = vadd.f32 %v2109, %v2344
        %v2392 = vadd.f32 %v2110, %v2347
        %v2393 = vadd.f32 %v2111, %v2350
        %v2394 = vadd.f32 %v2112, %v2353
        %v2395 = vadd.f32 %v2113, %v2356
        %v2396 = vadd.f32 %v2114, %v2359
        %v2397 = vadd.f32 %v2115, %v2362
        %v2398 = vadd.f32 %v2116, %v2365
        %v2399 = vld [vmem:[%s1834 + $0x2] sm:$0xff]
        %v2400 = vld [vmem:[%s1834 + $0xa] sm:$0xff]
        %v2401 = vld [vmem:[%s1834 + $0x1a] sm:$0xff]
        %v2402 = vld [vmem:[%s1834 + $0x22] sm:$0xff]
        %v2403 = vld [vmem:[%s1834 + $0x32] sm:$0xff]
        %v2404 = vld [vmem:[%s1834 + $0x3a] sm:$0xff]
        %v2405 = vld [vmem:[%s1834 + $0x4a] sm:$0xff]
        %v2406 = vld [vmem:[%s1834 + $0x52] sm:$0xff]
        %v2407 = vld [vmem:[%s1834 + $0x62] sm:$0xff]
        %v2408 = vld [vmem:[%s1834 + $0x6a] sm:$0xff]
        %v2409 = vld [vmem:[%s1834 + $0x7a] sm:$0xff]
        %v2410 = vld [vmem:[%s1834 + $0x82] sm:$0xff]
        %v2411 = vld [vmem:[%s1834 + $0x92] sm:$0xff]
        %v2412 = vld [vmem:[%s1834 + $0x9a] sm:$0xff]
        %v2413 = vld [vmem:[%s1834 + $0xaa] sm:$0xff]
        %v2414 = vld [vmem:[%s1834 + $0xb2] sm:$0xff]
        %v2415 = vld [vmem:[%s1834 + $0xc2] sm:$0xff]
        %v2416 = vld [vmem:[%s1834 + $0xca] sm:$0xff]
        %v2417 = vld [vmem:[%s1834 + $0xda] sm:$0xff]
        %v2418 = vld [vmem:[%s1834 + $0xe2] sm:$0xff]
        %v2419 = vld [vmem:[%s1834 + $0xf2] sm:$0xff]
        %v2420 = vld [vmem:[%s1834 + $0xfa] sm:$0xff]
        %v2421 = vld [vmem:[%s1834 + $0x10a] sm:$0xff]
        %v2422 = vld [vmem:[%s1834 + $0x112] sm:$0xff]
        %v2423 = vld [vmem:[%s1834 + $0x122] sm:$0xff]
        %v2424 = vld [vmem:[%s1834 + $0x12a] sm:$0xff]
        %v2425 = vld [vmem:[%s1834 + $0x13a] sm:$0xff]
        %v2426 = vld [vmem:[%s1834 + $0x142] sm:$0xff]
        %v2427 = vld [vmem:[%s1834 + $0x152] sm:$0xff]
        %v2428 = vld [vmem:[%s1834 + $0x15a] sm:$0xff]
        %v2429 = vld [vmem:[%s1834 + $0x16a] sm:$0xff]
        %v2430 = vld [vmem:[%s1834 + $0x172] sm:$0xff]
        %s2431 = scalar_lea.vmem %s1, 512
        %v2432 = vld [vmem:[%s2431] sm:$0xff]
        %v2433 = vld [vmem:[%s2431 + $0x8] sm:$0xff]
        %v2434 = vld [vmem:[%s2431 + $0x10] sm:$0xff]
        %v2435 = vld [vmem:[%s2431 + $0x18] sm:$0xff]
        %v2436 = vld [vmem:[%s2431 + $0x20] sm:$0xff]
        %v2437 = vld [vmem:[%s2431 + $0x28] sm:$0xff]
        %v2438 = vld [vmem:[%s2431 + $0x30] sm:$0xff]
        %v2439 = vld [vmem:[%s2431 + $0x38] sm:$0xff]
        %v2441 = vsel %vm286, %v2399, 0
        %v2444 = vsel %vm286, %v2400, 0
        %v2447 = vsel %vm286, %v2401, 0
        %v2450 = vsel %vm286, %v2402, 0
        %v2453 = vsel %vm286, %v2403, 0
        %v2456 = vsel %vm286, %v2404, 0
        %v2459 = vsel %vm286, %v2405, 0
        %v2462 = vsel %vm286, %v2406, 0
        %v2465 = vsel %vm286, %v2407, 0
        %v2468 = vsel %vm286, %v2408, 0
        %v2471 = vsel %vm286, %v2409, 0
        %v2474 = vsel %vm286, %v2410, 0
        %v2477 = vsel %vm286, %v2411, 0
        %v2480 = vsel %vm286, %v2412, 0
        %v2483 = vsel %vm286, %v2413, 0
        %v2486 = vsel %vm286, %v2414, 0
        %v2489 = vsel %vm286, %v2415, 0
        %v2492 = vsel %vm286, %v2416, 0
        %v2495 = vsel %vm286, %v2417, 0
        %v2498 = vsel %vm286, %v2418, 0
        %v2501 = vsel %vm286, %v2419, 0
        %v2504 = vsel %vm286, %v2420, 0
        %v2507 = vsel %vm286, %v2421, 0
        %v2510 = vsel %vm286, %v2422, 0
        %v2513 = vsel %vm286, %v2423, 0
        %v2516 = vsel %vm286, %v2424, 0
        %v2519 = vsel %vm286, %v2425, 0
        %v2522 = vsel %vm286, %v2426, 0
        %v2525 = vsel %vm286, %v2427, 0
        %v2528 = vsel %vm286, %v2428, 0
        %v2531 = vsel %vm286, %v2429, 0
        %v2534 = vsel %vm286, %v2430, 0
        %2536 = vmatpush.msra.mxu0 0.0
        %2537 = vmatpush.msra.mxu0 0.0
        %2538 = vmatpush.msra.mxu0 0.0
        %2539 = vmatpush.msra.mxu0 0.0
        %2540 = vmatpush.msra.mxu0 0.0
        %2541 = vmatpush.msra.mxu0 0.0
        %2542 = vmatpush.msra.mxu0 0.0
        %2543 = vmatpush.msra.mxu0 0.0
        %2544 = vmatpush.msra.mxu0 %v2439
        %2545 = vmatpush.msra.mxu0 %v2438
        %2546 = vmatpush.msra.mxu0 %v2437
        %2547 = vmatpush.msra.mxu0 %v2436
        %2548 = vmatpush.msra.mxu0 %v2435
        %2549 = vmatpush.msra.mxu0 %v2434
        %2550 = vmatpush.msra.mxu0 %v2433
        %2551 = vmatpush.msra.mxu0 %v2432
        %2552 = vmatmul.f32.gmra.mxu0 %v2441
        %v2553 = vpop.f32.mrf.mxu0
        %v2554 = vadd.f32 0.0, %v2553
        %2555 = vmatmul.f32.gmra.mxu0 %v2444
        %v2556 = vpop.f32.mrf.mxu0
        %v2557 = vadd.f32 0.0, %v2556
        %2558 = vmatmul.f32.gmra.mxu0 %v2447
        %v2559 = vpop.f32.mrf.mxu0
        %v2560 = vadd.f32 0.0, %v2559
        %2561 = vmatmul.f32.gmra.mxu0 %v2450
        %v2562 = vpop.f32.mrf.mxu0
        %v2563 = vadd.f32 0.0, %v2562
        %2564 = vmatmul.f32.gmra.mxu0 %v2453
        %v2565 = vpop.f32.mrf.mxu0
        %v2566 = vadd.f32 0.0, %v2565
        %2567 = vmatmul.f32.gmra.mxu0 %v2456
        %v2568 = vpop.f32.mrf.mxu0
        %v2569 = vadd.f32 0.0, %v2568
        %2570 = vmatmul.f32.gmra.mxu0 %v2459
        %v2571 = vpop.f32.mrf.mxu0
        %v2572 = vadd.f32 0.0, %v2571
        %2573 = vmatmul.f32.gmra.mxu0 %v2462
        %v2574 = vpop.f32.mrf.mxu0
        %v2575 = vadd.f32 0.0, %v2574
        %2576 = vmatmul.f32.gmra.mxu0 %v2465
        %v2577 = vpop.f32.mrf.mxu0
        %v2578 = vadd.f32 0.0, %v2577
        %2579 = vmatmul.f32.gmra.mxu0 %v2468
        %v2580 = vpop.f32.mrf.mxu0
        %v2581 = vadd.f32 0.0, %v2580
        %2582 = vmatmul.f32.gmra.mxu0 %v2471
        %v2583 = vpop.f32.mrf.mxu0
        %v2584 = vadd.f32 0.0, %v2583
        %2585 = vmatmul.f32.gmra.mxu0 %v2474
        %v2586 = vpop.f32.mrf.mxu0
        %v2587 = vadd.f32 0.0, %v2586
        %2588 = vmatmul.f32.gmra.mxu0 %v2477
        %v2589 = vpop.f32.mrf.mxu0
        %v2590 = vadd.f32 0.0, %v2589
        %2591 = vmatmul.f32.gmra.mxu0 %v2480
        %v2592 = vpop.f32.mrf.mxu0
        %v2593 = vadd.f32 0.0, %v2592
        %2594 = vmatmul.f32.gmra.mxu0 %v2483
        %v2595 = vpop.f32.mrf.mxu0
        %v2596 = vadd.f32 0.0, %v2595
        %2597 = vmatmul.f32.gmra.mxu0 %v2486
        %v2598 = vpop.f32.mrf.mxu0
        %v2599 = vadd.f32 0.0, %v2598
        %2600 = vmatmul.f32.gmra.mxu0 %v2489
        %v2601 = vpop.f32.mrf.mxu0
        %v2602 = vadd.f32 0.0, %v2601
        %2603 = vmatmul.f32.gmra.mxu0 %v2492
        %v2604 = vpop.f32.mrf.mxu0
        %v2605 = vadd.f32 0.0, %v2604
        %2606 = vmatmul.f32.gmra.mxu0 %v2495
        %v2607 = vpop.f32.mrf.mxu0
        %v2608 = vadd.f32 0.0, %v2607
        %2609 = vmatmul.f32.gmra.mxu0 %v2498
        %v2610 = vpop.f32.mrf.mxu0
        %v2611 = vadd.f32 0.0, %v2610
        %2612 = vmatmul.f32.gmra.mxu0 %v2501
        %v2613 = vpop.f32.mrf.mxu0
        %v2614 = vadd.f32 0.0, %v2613
        %2615 = vmatmul.f32.gmra.mxu0 %v2504
        %v2616 = vpop.f32.mrf.mxu0
        %v2617 = vadd.f32 0.0, %v2616
        %2618 = vmatmul.f32.gmra.mxu0 %v2507
        %v2619 = vpop.f32.mrf.mxu0
        %v2620 = vadd.f32 0.0, %v2619
        %2621 = vmatmul.f32.gmra.mxu0 %v2510
        %v2622 = vpop.f32.mrf.mxu0
        %v2623 = vadd.f32 0.0, %v2622
        %2624 = vmatmul.f32.gmra.mxu0 %v2513
        %v2625 = vpop.f32.mrf.mxu0
        %v2626 = vadd.f32 0.0, %v2625
        %2627 = vmatmul.f32.gmra.mxu0 %v2516
        %v2628 = vpop.f32.mrf.mxu0
        %v2629 = vadd.f32 0.0, %v2628
        %2630 = vmatmul.f32.gmra.mxu0 %v2519
        %v2631 = vpop.f32.mrf.mxu0
        %v2632 = vadd.f32 0.0, %v2631
        %2633 = vmatmul.f32.gmra.mxu0 %v2522
        %v2634 = vpop.f32.mrf.mxu0
        %v2635 = vadd.f32 0.0, %v2634
        %2636 = vmatmul.f32.gmra.mxu0 %v2525
        %v2637 = vpop.f32.mrf.mxu0
        %v2638 = vadd.f32 0.0, %v2637
        %2639 = vmatmul.f32.gmra.mxu0 %v2528
        %v2640 = vpop.f32.mrf.mxu0
        %v2641 = vadd.f32 0.0, %v2640
        %2642 = vmatmul.f32.gmra.mxu0 %v2531
        %v2643 = vpop.f32.mrf.mxu0
        %v2644 = vadd.f32 0.0, %v2643
        %2645 = vmatmul.f32.gmra.mxu0 %v2534
        %v2646 = vpop.f32.mrf.mxu0
        %v2647 = vadd.f32 0.0, %v2646
        %2648 = vdwg.mxu0
        %v2649 = vadd.f32 %v2367, %v2554
        %v2650 = vadd.f32 %v2368, %v2557
        %v2651 = vadd.f32 %v2369, %v2560
        %v2652 = vadd.f32 %v2370, %v2563
        %v2653 = vadd.f32 %v2371, %v2566
        %v2654 = vadd.f32 %v2372, %v2569
        %v2655 = vadd.f32 %v2373, %v2572
        %v2656 = vadd.f32 %v2374, %v2575
        %v2657 = vadd.f32 %v2375, %v2578
        %v2658 = vadd.f32 %v2376, %v2581
        %v2659 = vadd.f32 %v2377, %v2584
        %v2660 = vadd.f32 %v2378, %v2587
        %v2661 = vadd.f32 %v2379, %v2590
        %v2662 = vadd.f32 %v2380, %v2593
        %v2663 = vadd.f32 %v2381, %v2596
        %v2664 = vadd.f32 %v2382, %v2599
        %v2665 = vadd.f32 %v2383, %v2602
        %v2666 = vadd.f32 %v2384, %v2605
        %v2667 = vadd.f32 %v2385, %v2608
        %v2668 = vadd.f32 %v2386, %v2611
        %v2669 = vadd.f32 %v2387, %v2614
        %v2670 = vadd.f32 %v2388, %v2617
        %v2671 = vadd.f32 %v2389, %v2620
        %v2672 = vadd.f32 %v2390, %v2623
        %v2673 = vadd.f32 %v2391, %v2626
        %v2674 = vadd.f32 %v2392, %v2629
        %v2675 = vadd.f32 %v2393, %v2632
        %v2676 = vadd.f32 %v2394, %v2635
        %v2677 = vadd.f32 %v2395, %v2638
        %v2678 = vadd.f32 %v2396, %v2641
        %v2679 = vadd.f32 %v2397, %v2644
        %v2680 = vadd.f32 %v2398, %v2647
        %v2681 = vld [vmem:[%s2] sm:$0x1]
        %v2683 = vperm.slane %v2681, 0
        %v2685 = vadd.f32 %v2649, %v2683
        %v2686 = vadd.f32 %v2650, %v2683
        %v2687 = vadd.f32 %v2651, %v2683
        %v2688 = vadd.f32 %v2652, %v2683
        %v2689 = vadd.f32 %v2653, %v2683
        %v2690 = vadd.f32 %v2654, %v2683
        %v2691 = vadd.f32 %v2655, %v2683
        %v2692 = vadd.f32 %v2656, %v2683
        %v2693 = vadd.f32 %v2657, %v2683
        %v2694 = vadd.f32 %v2658, %v2683
        %v2695 = vadd.f32 %v2659, %v2683
        %v2696 = vadd.f32 %v2660, %v2683
        %v2697 = vadd.f32 %v2661, %v2683
        %v2698 = vadd.f32 %v2662, %v2683
        %v2699 = vadd.f32 %v2663, %v2683
        %v2700 = vadd.f32 %v2664, %v2683
        %v2701 = vadd.f32 %v2665, %v2683
        %v2702 = vadd.f32 %v2666, %v2683
        %v2703 = vadd.f32 %v2667, %v2683
        %v2704 = vadd.f32 %v2668, %v2683
        %v2705 = vadd.f32 %v2669, %v2683
        %v2706 = vadd.f32 %v2670, %v2683
        %v2707 = vadd.f32 %v2671, %v2683
        %v2708 = vadd.f32 %v2672, %v2683
        %v2709 = vadd.f32 %v2673, %v2683
        %v2710 = vadd.f32 %v2674, %v2683
        %v2711 = vadd.f32 %v2675, %v2683
        %v2712 = vadd.f32 %v2676, %v2683
        %v2713 = vadd.f32 %v2677, %v2683
        %v2714 = vadd.f32 %v2678, %v2683
        %v2715 = vadd.f32 %v2679, %v2683
        %v2716 = vadd.f32 %v2680, %v2683
        %v2717 = vsel %vm286, %v2685, 0.0
        %v2718 = vsel %vm286, %v2686, 0.0
        %v2719 = vadd.f32 %v2717, %v2718
        %v2720 = vsel %vm286, %v2687, 0.0
        %v2721 = vadd.f32 %v2719, %v2720
        %v2722 = vsel %vm286, %v2688, 0.0
        %v2723 = vadd.f32 %v2721, %v2722
        %v2724 = vsel %vm286, %v2689, 0.0
        %v2725 = vadd.f32 %v2723, %v2724
        %v2726 = vsel %vm286, %v2690, 0.0
        %v2727 = vadd.f32 %v2725, %v2726
        %v2728 = vsel %vm286, %v2691, 0.0
        %v2729 = vadd.f32 %v2727, %v2728
        %v2730 = vsel %vm286, %v2692, 0.0
        %v2731 = vadd.f32 %v2729, %v2730
        %v2732 = vsel %vm286, %v2693, 0.0
        %v2733 = vadd.f32 %v2731, %v2732
        %v2734 = vsel %vm286, %v2694, 0.0
        %v2735 = vadd.f32 %v2733, %v2734
        %v2736 = vsel %vm286, %v2695, 0.0
        %v2737 = vadd.f32 %v2735, %v2736
        %v2738 = vsel %vm286, %v2696, 0.0
        %v2739 = vadd.f32 %v2737, %v2738
        %v2740 = vsel %vm286, %v2697, 0.0
        %v2741 = vadd.f32 %v2739, %v2740
        %v2742 = vsel %vm286, %v2698, 0.0
        %v2743 = vadd.f32 %v2741, %v2742
        %v2744 = vsel %vm286, %v2699, 0.0
        %v2745 = vadd.f32 %v2743, %v2744
        %v2746 = vsel %vm286, %v2700, 0.0
        %v2747 = vadd.f32 %v2745, %v2746
        %v2748 = vsel %vm286, %v2701, 0.0
        %v2749 = vadd.f32 %v2747, %v2748
        %v2750 = vsel %vm286, %v2702, 0.0
        %v2751 = vadd.f32 %v2749, %v2750
        %v2752 = vsel %vm286, %v2703, 0.0
        %v2753 = vadd.f32 %v2751, %v2752
        %v2754 = vsel %vm286, %v2704, 0.0
        %v2755 = vadd.f32 %v2753, %v2754
        %v2756 = vsel %vm286, %v2705, 0.0
        %v2757 = vadd.f32 %v2755, %v2756
        %v2758 = vsel %vm286, %v2706, 0.0
        %v2759 = vadd.f32 %v2757, %v2758
        %v2760 = vsel %vm286, %v2707, 0.0
        %v2761 = vadd.f32 %v2759, %v2760
        %v2762 = vsel %vm286, %v2708, 0.0
        %v2763 = vadd.f32 %v2761, %v2762
        %v2764 = vsel %vm286, %v2709, 0.0
        %v2765 = vadd.f32 %v2763, %v2764
        %v2766 = vsel %vm286, %v2710, 0.0
        %v2767 = vadd.f32 %v2765, %v2766
        %v2768 = vsel %vm286, %v2711, 0.0
        %v2769 = vadd.f32 %v2767, %v2768
        %v2770 = vsel %vm286, %v2712, 0.0
        %v2771 = vadd.f32 %v2769, %v2770
        %v2772 = vsel %vm286, %v2713, 0.0
        %v2773 = vadd.f32 %v2771, %v2772
        %v2774 = vsel %vm286, %v2714, 0.0
        %v2775 = vadd.f32 %v2773, %v2774
        %v2776 = vsel %vm286, %v2715, 0.0
        %v2777 = vadd.f32 %v2775, %v2776
        %v2778 = vsel %vm286, %v2716, 0.0
        %v2779 = vadd.f32 %v2777, %v2778
        %v2780 = vrot.slane %v2779, 4
        %v2781 = vadd.f32 %v2779, %v2780
        %v2782 = vrot.slane %v2781, 2
        %v2783 = vadd.f32 %v2781, %v2782
        %v2784 = vrot.slane %v2783, 1
        %v2785 = vadd.f32 %v2783, %v2784
        %vm2786 = vcmask 516096
        %2787 = vst.msk [vmem:[%s193] sm:$0x1] %vm2786, %v2785
        %v2788 = vmul.f32 %v2685, %v2685
        %v2789 = vmul.f32 %v2686, %v2686
        %v2790 = vmul.f32 %v2687, %v2687
        %v2791 = vmul.f32 %v2688, %v2688
        %v2792 = vmul.f32 %v2689, %v2689
        %v2793 = vmul.f32 %v2690, %v2690
        %v2794 = vmul.f32 %v2691, %v2691
        %v2795 = vmul.f32 %v2692, %v2692
        %v2796 = vmul.f32 %v2693, %v2693
        %v2797 = vmul.f32 %v2694, %v2694
        %v2798 = vmul.f32 %v2695, %v2695
        %v2799 = vmul.f32 %v2696, %v2696
        %v2800 = vmul.f32 %v2697, %v2697
        %v2801 = vmul.f32 %v2698, %v2698
        %v2802 = vmul.f32 %v2699, %v2699
        %v2803 = vmul.f32 %v2700, %v2700
        %v2804 = vmul.f32 %v2701, %v2701
        %v2805 = vmul.f32 %v2702, %v2702
        %v2806 = vmul.f32 %v2703, %v2703
        %v2807 = vmul.f32 %v2704, %v2704
        %v2808 = vmul.f32 %v2705, %v2705
        %v2809 = vmul.f32 %v2706, %v2706
        %v2810 = vmul.f32 %v2707, %v2707
        %v2811 = vmul.f32 %v2708, %v2708
        %v2812 = vmul.f32 %v2709, %v2709
        %v2813 = vmul.f32 %v2710, %v2710
        %v2814 = vmul.f32 %v2711, %v2711
        %v2815 = vmul.f32 %v2712, %v2712
        %v2816 = vmul.f32 %v2713, %v2713
        %v2817 = vmul.f32 %v2714, %v2714
        %v2818 = vmul.f32 %v2715, %v2715
        %v2819 = vmul.f32 %v2716, %v2716
        %v2820 = vsel %vm286, %v2788, 0.0
        %v2821 = vsel %vm286, %v2789, 0.0
        %v2822 = vadd.f32 %v2820, %v2821
        %v2823 = vsel %vm286, %v2790, 0.0
        %v2824 = vadd.f32 %v2822, %v2823
        %v2825 = vsel %vm286, %v2791, 0.0
        %v2826 = vadd.f32 %v2824, %v2825
        %v2827 = vsel %vm286, %v2792, 0.0
        %v2828 = vadd.f32 %v2826, %v2827
        %v2829 = vsel %vm286, %v2793, 0.0
        %v2830 = vadd.f32 %v2828, %v2829
        %v2831 = vsel %vm286, %v2794, 0.0
        %v2832 = vadd.f32 %v2830, %v2831
        %v2833 = vsel %vm286, %v2795, 0.0
        %v2834 = vadd.f32 %v2832, %v2833
        %v2835 = vsel %vm286, %v2796, 0.0
        %v2836 = vadd.f32 %v2834, %v2835
        %v2837 = vsel %vm286, %v2797, 0.0
        %v2838 = vadd.f32 %v2836, %v2837
        %v2839 = vsel %vm286, %v2798, 0.0
        %v2840 = vadd.f32 %v2838, %v2839
        %v2841 = vsel %vm286, %v2799, 0.0
        %v2842 = vadd.f32 %v2840, %v2841
        %v2843 = vsel %vm286, %v2800, 0.0
        %v2844 = vadd.f32 %v2842, %v2843
        %v2845 = vsel %vm286, %v2801, 0.0
        %v2846 = vadd.f32 %v2844, %v2845
        %v2847 = vsel %vm286, %v2802, 0.0
        %v2848 = vadd.f32 %v2846, %v2847
        %v2849 = vsel %vm286, %v2803, 0.0
        %v2850 = vadd.f32 %v2848, %v2849
        %v2851 = vsel %vm286, %v2804, 0.0
        %v2852 = vadd.f32 %v2850, %v2851
        %v2853 = vsel %vm286, %v2805, 0.0
        %v2854 = vadd.f32 %v2852, %v2853
        %v2855 = vsel %vm286, %v2806, 0.0
        %v2856 = vadd.f32 %v2854, %v2855
        %v2857 = vsel %vm286, %v2807, 0.0
        %v2858 = vadd.f32 %v2856, %v2857
        %v2859 = vsel %vm286, %v2808, 0.0
        %v2860 = vadd.f32 %v2858, %v2859
        %v2861 = vsel %vm286, %v2809, 0.0
        %v2862 = vadd.f32 %v2860, %v2861
        %v2863 = vsel %vm286, %v2810, 0.0
        %v2864 = vadd.f32 %v2862, %v2863
        %v2865 = vsel %vm286, %v2811, 0.0
        %v2866 = vadd.f32 %v2864, %v2865
        %v2867 = vsel %vm286, %v2812, 0.0
        %v2868 = vadd.f32 %v2866, %v2867
        %v2869 = vsel %vm286, %v2813, 0.0
        %v2870 = vadd.f32 %v2868, %v2869
        %v2871 = vsel %vm286, %v2814, 0.0
        %v2872 = vadd.f32 %v2870, %v2871
        %v2873 = vsel %vm286, %v2815, 0.0
        %v2874 = vadd.f32 %v2872, %v2873
        %v2875 = vsel %vm286, %v2816, 0.0
        %v2876 = vadd.f32 %v2874, %v2875
        %v2877 = vsel %vm286, %v2817, 0.0
        %v2878 = vadd.f32 %v2876, %v2877
        %v2879 = vsel %vm286, %v2818, 0.0
        %v2880 = vadd.f32 %v2878, %v2879
        %v2881 = vsel %vm286, %v2819, 0.0
        %v2882 = vadd.f32 %v2880, %v2881
        %v2883 = vrot.slane %v2882, 4
        %v2884 = vadd.f32 %v2882, %v2883
        %v2885 = vrot.slane %v2884, 2
        %v2886 = vadd.f32 %v2884, %v2885
        %v2887 = vrot.slane %v2886, 1
        %v2888 = vadd.f32 %v2886, %v2887
        %2889 = vst.msk [vmem:[%s199] sm:$0x1] %vm2786, %v2888
        %s2890 = sand.u32 %s98, 1
        %s2891 = scalar_lea.sflag [#allocation3], %s2890
        %s2892 = sand.u32 %s98, 1
        %s2893 = scalar_lea.vmem [#allocation2], %s2892
        %s2894 = sand.u32 %s124, 1
        %s2895 = scalar_lea.sflag [#allocation5], %s2894
        %s2896 = sand.u32 %s124, 1
        %s2897 = scalar_lea.vmem [#allocation4], %s2896
        // Predicated region
        $region33: #{tpu_custom_call.1} parent=31 // pred_check
          %p2898 = pneg %p108
        $region34: #{tpu_custom_call.1} parent=31 // pred_check_branch
          %2900 = sbr.rel (%p2898) target = $region36
        $region35: #{tpu_custom_call.1} parent=31 // pred_region
          %2902 = vsyncadd %s2891, 0
          %s2903 = scalar_lea.hbm %s3, %s22
          %s2905 = sshll.u32 %s2893, 4
          %s2906 = int_to_ptr.vmem [resolvable:$true] %s2905
          %s2907 = sshll.u32 %s2903, 4
          %s2908 = int_to_ptr.hbm [resolvable:$true] %s2907
          %2910 = dma.vmem_to_hbm [thread:$0]  %s2906, 16, %s2908, %s2891
        $region36: #{tpu_custom_call.1} parent=31 // pred_fallthru
          _
        // Predicated region
        $region37: #{tpu_custom_call.1} parent=31 // pred_check
          %p2911 = pneg %p134
        $region38: #{tpu_custom_call.1} parent=31 // pred_check_branch
          %2913 = sbr.rel (%p2911) target = $region40
        $region39: #{tpu_custom_call.1} parent=31 // pred_region
          %2915 = vsyncadd %s2895, 0
          %s2916 = scalar_lea.hbm %s4, %s22
          %s2918 = sshll.u32 %s2897, 4
          %s2919 = int_to_ptr.vmem [resolvable:$true] %s2918
          %s2920 = sshll.u32 %s2916, 4
          %s2921 = int_to_ptr.hbm [resolvable:$true] %s2920
          %2923 = dma.vmem_to_hbm [thread:$0]  %s2919, 16, %s2921, %s2895
        $region40: #{tpu_custom_call.1} parent=31 // pred_fallthru
          _
      $region32: #{tpu_custom_call.1} parent=5 // pred_fallthru
        _
      %p2924 = scmp.le.s32.totalorder 2, %s17
      // Predicated region
      $region41: #{tpu_custom_call.1} parent=5 // pred_check
        %p2925 = pneg %p2924
      $region42: #{tpu_custom_call.1} parent=5 // pred_check_branch
        %2927 = sbr.rel (%p2925) target = $region44
      $region43: #{tpu_custom_call.1} parent=5 // pred_region
        %s2928 = ssub.s32 %s17, 2
        // Predicated region
        $region45: #{tpu_custom_call.1} parent=43 // pred_check
          %p2929 = pneg %p114
        $region46: #{tpu_custom_call.1} parent=43 // pred_check_branch
          %2931 = sbr.rel (%p2929) target = $region48
        $region47: #{tpu_custom_call.1} parent=43 // pred_region
          %s2932 = sand.u32 %s99, 1
          %s2933 = scalar_lea.sflag [#allocation3], %s2932
          %s2934 = sand.u32 %s99, 1
          %s2935 = scalar_lea.vmem [#allocation2], %s2934
          %2937 = dma.done %s2933, 16
        $region48: #{tpu_custom_call.1} parent=43 // pred_fallthru
          _
        // Predicated region
        $region49: #{tpu_custom_call.1} parent=43 // pred_check
          %p2938 = pneg %p140
        $region50: #{tpu_custom_call.1} parent=43 // pred_check_branch
          %2940 = sbr.rel (%p2938) target = $region52
        $region51: #{tpu_custom_call.1} parent=43 // pred_region
          %s2941 = sand.u32 %s125, 1
          %s2942 = scalar_lea.sflag [#allocation5], %s2941
          %s2943 = sand.u32 %s125, 1
          %s2944 = scalar_lea.vmem [#allocation4], %s2943
          %2946 = dma.done %s2942, 16
        $region52: #{tpu_custom_call.1} parent=43 // pred_fallthru
          _
      $region44: #{tpu_custom_call.1} parent=5 // pred_fallthru
        _
    $region6: #{tpu_custom_call.1} parent=1 // loop_footer
      %s21 = sadd.s32 1, %s17
    $region7: #{tpu_custom_call.1} parent=1 // loop_footer_branch
      %16 = sbr.rel target = $region3
    $region8: #{tpu_custom_call.1} parent=1 // loop_exit
      _
    %2947 = vsyncpa [#allocation3], 1
    %s2948 = scalar_lea.sflag [#allocation3], 1
    %2949 = vsyncpa %s2948, 1
    %2950 = vsyncpa [#allocation5], 1
    %s2951 = scalar_lea.sflag [#allocation5], 1
    %2952 = vsyncpa %s2951, 1

</llo_original>
